<compile_context>
chip_gen: v5e
topology: v5e:2x2
jax: 0.10.0
libtpu: 0.0.40
codegen_flags: <defaults>
</compile_context>

<pallas_src>
import jax
import jax.numpy as jnp
from jax.experimental import pallas as pl
from jax.experimental.pallas import tpu as pltpu

BN_EPS = 1e-5


def _round_up(x, m):
    return ((x + m - 1) // m) * m


def aunet_middle_forward(x_nchw, w_oihw, b, gamma, beta):
    # Conv bias is accepted (module interface) but cancels exactly under the
    # train-mode BatchNorm mean subtraction, so it is never sent to the kernels.
    del b

    N, Cin, H, W = x_nchw.shape
    Cout = w_oihw.shape[0]
    Hp, Wp = H + 2, W + 2
    HW = H * W
    K9 = 9 * Cin
    K9P = _round_up(K9, 8)          # contraction dim: multiple of 8 only (not 128)
    M = N * HW
    inv_m = 1.0 / float(M)

    # ---- wrapper glue: one cheap zero-pad + weight reshape (no im2col, no transpose) ----
    x_pad = jnp.pad(x_nchw, ((0, 0), (0, 0), (1, 1), (1, 1)))            # (N, Cin, Hp, Wp)
    # w2d[co, (ky*3+kx)*Cin + ci] = w[co, ci, ky, kx]  -> matches in-kernel patch ordering
    w2d = jnp.transpose(w_oihw, (0, 2, 3, 1)).reshape(Cout, K9)
    w2d = jnp.pad(w2d, ((0, 0), (0, K9P - K9)))                          # (Cout, K9P)
    gamma2 = gamma.reshape(Cout, 1).astype(jnp.float32)
    beta2 = beta.reshape(Cout, 1).astype(jnp.float32)

    # megacore split of the batch for pass-1 partial statistics (v7x: 2 TCs/chip)
    ncore = 2 if (N >= 2 and N % 2 == 0) else 1
    npc = N // ncore

    # VMEM budget (double-buffered blocks + resident weights + headroom)
    in_blk = Cin * Hp * Wp * 4
    out_blk = Cout * HW * 4
    need = 3 * in_blk + 3 * out_blk + Cout * K9P * 4 + (2 * ncore + 2) * Cout * 4 + (2 << 20)
    vmem_limit = int(min(max(need, 8 << 20), 32 << 20))

    # ---------------- shared in-kernel conv tile (im2col built in VMEM) ----------------
    def _conv_tile(x_ref, w_ref):
        x_img = x_ref[0]                                                 # (Cin, Hp, Wp)
        pieces = [x_img[:, ky:ky + H, kx:kx + W].reshape(Cin, HW)
                  for ky in range(3) for kx in range(3)]                 # 9 x (Cin, HW)
        if K9P > K9:
            pieces.append(jnp.zeros((K9P - K9, HW), jnp.float32))
        p_t = jnp.concatenate(pieces, axis=0)                            # (K9P, HW)
        # channel-major MXU matmul, f32 accumulate (pixels on the lane axis)
        return jnp.dot(w_ref[...], p_t, preferred_element_type=jnp.float32)  # (Cout, HW)

    # ---------------- pass 1: streaming per-channel sum / sum-of-squares ----------------
    def stats_kernel(x_ref, w_ref, sum_ref, sq_ref):
        conv = _conv_tile(x_ref, w_ref)                                  # (Cout, HW) f32
        ts = jnp.sum(conv, axis=1, keepdims=True)[None]                  # (1, Cout, 1)
        tq = jnp.sum(conv * conv, axis=1, keepdims=True)[None]           # (1, Cout, 1)
        i = pl.program_id(1)

        @pl.when(i == 0)
        def _():
            sum_ref[...] = ts
            sq_ref[...] = tq

        @pl.when(i > 0)
        def _():
            sum_ref[...] = sum_ref[...] + ts
            sq_ref[...] = sq_ref[...] + tq

    ch_sum, ch_sq = pl.pallas_call(
        stats_kernel,
        out_shape=(
            jax.ShapeDtypeStruct((ncore, Cout, 1), jnp.float32),
            jax.ShapeDtypeStruct((ncore, Cout, 1), jnp.float32),
        ),
        grid_spec=pltpu.PrefetchScalarGridSpec(
            num_scalar_prefetch=0,
            grid=(ncore, npc),
            in_specs=[
                pl.BlockSpec((1, Cin, Hp, Wp), lambda c, i: (c * npc + i, 0, 0, 0)),
                pl.BlockSpec((Cout, K9P), lambda c, i: (0, 0)),          # weights resident
            ],
            out_specs=(
                pl.BlockSpec((1, Cout, 1), lambda c, i: (c, 0, 0)),      # per-core partial
                pl.BlockSpec((1, Cout, 1), lambda c, i: (c, 0, 0)),
            ),
        ),
        compiler_params=pltpu.CompilerParams(
            dimension_semantics=("parallel", "arbitrary"),
            vmem_limit_bytes=vmem_limit),
    )(x_pad, w2d)

    # ---------------- pass 2: recompute conv tile, fuse BN scale/shift + ReLU ----------------
    # The tiny BN finalize is folded in here (per-step cost ~ O(Cout), negligible):
    # reduce the per-core partials, build s = gamma*rsqrt(var+eps), t = beta - mean*s.
    def bn_relu_kernel(x_ref, w_ref, sum_ref, sq_ref, g_ref, b_ref, o_ref):
        conv = _conv_tile(x_ref, w_ref)                                  # (Cout, HW) f32
        c_sum = jnp.sum(sum_ref[...], axis=0)                            # (Cout, 1)
        c_sq = jnp.sum(sq_ref[...], axis=0)                              # (Cout, 1)
        mean = c_sum * inv_m
        var = jnp.maximum(c_sq * inv_m - mean * mean, 0.0)               # clamp cancellation
        s = g_ref[...] * jax.lax.rsqrt(var + BN_EPS)                     # (Cout, 1)
        t = b_ref[...] - mean * s
        o_ref[...] = jnp.maximum(conv * s + t, 0.0)[None]                # (1, Cout, HW)

    out_flat = pl.pallas_call(
        bn_relu_kernel,
        out_shape=jax.ShapeDtypeStruct((N, Cout, HW), jnp.float32),
        grid_spec=pltpu.PrefetchScalarGridSpec(
            num_scalar_prefetch=0,
            grid=(N,),
            in_specs=[
                pl.BlockSpec((1, Cin, Hp, Wp), lambda n: (n, 0, 0, 0)),
                pl.BlockSpec((Cout, K9P), lambda n: (0, 0)),
                pl.BlockSpec((ncore, Cout, 1), lambda n: (0, 0, 0)),
                pl.BlockSpec((ncore, Cout, 1), lambda n: (0, 0, 0)),
                pl.BlockSpec((Cout, 1), lambda n: (0, 0)),
                pl.BlockSpec((Cout, 1), lambda n: (0, 0)),
            ],
            out_specs=pl.BlockSpec((1, Cout, HW), lambda n: (n, 0, 0)),  # NCHW-flat, lane-dense
        ),
        compiler_params=pltpu.CompilerParams(
            dimension_semantics=("parallel",),
            vmem_limit_bytes=vmem_limit),
    )(x_pad, w2d, ch_sum, ch_sq, gamma2, beta2)

    # metadata-only reshape: output is already channel-major (no transpose / copy pass)
    return out_flat.reshape(N, Cout, H, W)


def reference(x_nchw, w_oihw, b, gamma, beta):
    y = jax.lax.conv_general_dilated(
        x_nchw, w_oihw, window_strides=(1, 1), padding=((1, 1), (1, 1)),
        dimension_numbers=("NCHW", "OIHW", "NCHW"))
    y = y + b.reshape(1, -1, 1, 1)
    mean = jnp.mean(y, axis=(0, 2, 3), keepdims=True)
    var = jnp.mean((y - mean) ** 2, axis=(0, 2, 3), keepdims=True)
    y = (y - mean) * jax.lax.rsqrt(var + BN_EPS)
    y = y * gamma.reshape(1, -1, 1, 1) + beta.reshape(1, -1, 1, 1)
    return jnp.maximum(y, 0.0)


if __name__ == "__main__":
    N, Cin, Cout, H, W = 2, 4, 8, 16, 16

    key = jax.random.PRNGKey(0)
    kx, kw, kb = jax.random.split(key, 3)

    x = jax.random.normal(kx, (N, Cin, H, W), dtype=jnp.float32)

    # deterministic synthetic parameters (PyTorch-like uniform init ranges)
    fan_in = Cin * 3 * 3
    bound = 1.0 / float(fan_in) ** 0.5
    w = jax.random.uniform(kw, (Cout, Cin, 3, 3), minval=-bound, maxval=bound,
                           dtype=jnp.float32)
    b = jax.random.uniform(kb, (Cout,), minval=-bound, maxval=bound,
                           dtype=jnp.float32)
    gamma = jnp.ones((Cout,), jnp.float32)   # BatchNorm2d default weight
    beta = jnp.zeros((Cout,), jnp.float32)   # BatchNorm2d default bias

    out = aunet_middle_forward(x, w, b, gamma, beta)
    out = jax.block_until_ready(out)

    ref = reference(x, w, b, gamma, beta)
    assert out.shape == (N, Cout, H, W)
    max_err = float(jnp.max(jnp.abs(out - ref)))
    assert jnp.allclose(out, ref, atol=1e-3, rtol=1e-3), max_err

    print("KERNEL_OK")
</pallas_src>

<mosaic_0001>
module attributes {stable_mosaic.version = 11 : i64} {
  func.func @stats_kernel(%arg0: i32, %arg1: i32, %arg2: memref<1x4x18x18xf32, #tpu.memory_space<vmem>>, %arg3: memref<8x40xf32, #tpu.memory_space<vmem>>, %arg4: memref<1x8x1xf32, #tpu.memory_space<vmem>>, %arg5: memref<1x8x1xf32, #tpu.memory_space<vmem>>) attributes {dimension_semantics = [#tpu.dimension_semantics<parallel>, #tpu.dimension_semantics<arbitrary>], iteration_bounds = array<i64: 2, 1>, scalar_prefetch = 0 : i64, scratch_operands = 0 : i64, tpu.core_type = #tpu.core_type<tc>, window_params = [{transform_indices = @transform_0, window_bounds = array<i64: 1, 4, 18, 18>}, {pipeline_mode = #tpu.pipeline_mode<synchronous>, transform_indices = @transform_1, window_bounds = array<i64: 8, 40>}, {transform_indices = @transform_2, window_bounds = array<i64: 1, 8, 1>}, {transform_indices = @transform_3, window_bounds = array<i64: 1, 8, 1>}]} {
    %c0 = arith.constant 0 : index
    %c0_0 = arith.constant 0 : index
    %c0_1 = arith.constant 0 : index
    %c0_2 = arith.constant 0 : index
    %0 = vector.load %arg2[%c0, %c0_0, %c0_1, %c0_2] : memref<1x4x18x18xf32, #tpu.memory_space<vmem>>, vector<1x4x18x18xf32>
    %1 = vector.shape_cast %0 : vector<1x4x18x18xf32> to vector<4x18x18xf32>
    %2 = vector.extract_strided_slice %1 {offsets = [0, 0, 0], sizes = [4, 16, 16], strides = [1, 1, 1]} : vector<4x18x18xf32> to vector<4x16x16xf32>
    %3 = vector.shape_cast %2 : vector<4x16x16xf32> to vector<4x256xf32>
    %4 = vector.extract_strided_slice %1 {offsets = [0, 0, 1], sizes = [4, 16, 16], strides = [1, 1, 1]} : vector<4x18x18xf32> to vector<4x16x16xf32>
    %5 = vector.shape_cast %4 : vector<4x16x16xf32> to vector<4x256xf32>
    %6 = vector.extract_strided_slice %1 {offsets = [0, 0, 2], sizes = [4, 16, 16], strides = [1, 1, 1]} : vector<4x18x18xf32> to vector<4x16x16xf32>
    %7 = vector.shape_cast %6 : vector<4x16x16xf32> to vector<4x256xf32>
    %8 = vector.extract_strided_slice %1 {offsets = [0, 1, 0], sizes = [4, 16, 16], strides = [1, 1, 1]} : vector<4x18x18xf32> to vector<4x16x16xf32>
    %9 = vector.shape_cast %8 : vector<4x16x16xf32> to vector<4x256xf32>
    %10 = vector.extract_strided_slice %1 {offsets = [0, 1, 1], sizes = [4, 16, 16], strides = [1, 1, 1]} : vector<4x18x18xf32> to vector<4x16x16xf32>
    %11 = vector.shape_cast %10 : vector<4x16x16xf32> to vector<4x256xf32>
    %12 = vector.extract_strided_slice %1 {offsets = [0, 1, 2], sizes = [4, 16, 16], strides = [1, 1, 1]} : vector<4x18x18xf32> to vector<4x16x16xf32>
    %13 = vector.shape_cast %12 : vector<4x16x16xf32> to vector<4x256xf32>
    %14 = vector.extract_strided_slice %1 {offsets = [0, 2, 0], sizes = [4, 16, 16], strides = [1, 1, 1]} : vector<4x18x18xf32> to vector<4x16x16xf32>
    %15 = vector.shape_cast %14 : vector<4x16x16xf32> to vector<4x256xf32>
    %16 = vector.extract_strided_slice %1 {offsets = [0, 2, 1], sizes = [4, 16, 16], strides = [1, 1, 1]} : vector<4x18x18xf32> to vector<4x16x16xf32>
    %17 = vector.shape_cast %16 : vector<4x16x16xf32> to vector<4x256xf32>
    %18 = vector.extract_strided_slice %1 {offsets = [0, 2, 2], sizes = [4, 16, 16], strides = [1, 1, 1]} : vector<4x18x18xf32> to vector<4x16x16xf32>
    %19 = vector.shape_cast %18 : vector<4x16x16xf32> to vector<4x256xf32>
    %cst = arith.constant 0.000000e+00 : f32
    %20 = vector.broadcast %cst : f32 to vector<4x256xf32>
    %21 = tpu.concatenate %3, %5, %7, %9, %11, %13, %15, %17, %19, %20 in 0 : vector<4x256xf32>, vector<4x256xf32>, vector<4x256xf32>, vector<4x256xf32>, vector<4x256xf32>, vector<4x256xf32>, vector<4x256xf32>, vector<4x256xf32>, vector<4x256xf32>, vector<4x256xf32> -> vector<40x256xf32>
    %c0_3 = arith.constant 0 : index
    %c0_4 = arith.constant 0 : index
    %22 = vector.load %arg3[%c0_3, %c0_4] : memref<8x40xf32, #tpu.memory_space<vmem>>, vector<8x40xf32>
    %cst_5 = arith.constant dense<0.000000e+00> : vector<8x256xf32>
    %23 = tpu.matmul %22, %21, %cst_5 {dimension_numbers = #tpu.dot_dimension_numbers<[1], [0], [0], [1], [0, 0, 1, 1], [], []>} : vector<8x40xf32>, vector<40x256xf32>, vector<8x256xf32> -> vector<8x256xf32>
    %cst_6 = arith.constant dense<0.000000e+00> : vector<8xf32>
    %24 = vector.multi_reduction <add>, %23, %cst_6 [1] : vector<8x256xf32> to vector<8xf32>
    %25 = vector.shape_cast %24 : vector<8xf32> to vector<8x1xf32>
    %26 = vector.shape_cast %25 : vector<8x1xf32> to vector<1x8x1xf32>
    %27 = arith.mulf %23, %23 : vector<8x256xf32>
    %cst_7 = arith.constant dense<0.000000e+00> : vector<8xf32>
    %28 = vector.multi_reduction <add>, %27, %cst_7 [1] : vector<8x256xf32> to vector<8xf32>
    %29 = vector.shape_cast %28 : vector<8xf32> to vector<8x1xf32>
    %30 = vector.shape_cast %29 : vector<8x1xf32> to vector<1x8x1xf32>
    %c0_i32 = arith.constant 0 : i32
    %31 = arith.cmpi eq, %arg1, %c0_i32 : i32
    %32 = arith.extui %31 : i1 to i32
    %c0_i32_8 = arith.constant 0 : i32
    %33 = arith.cmpi ne, %32, %c0_i32_8 : i32
    scf.if %33 {
      %c0_11 = arith.constant 0 : index
      %c0_12 = arith.constant 0 : index
      %c0_13 = arith.constant 0 : index
      %37 = vector.load %arg4[%c0_11, %c0_12, %c0_13] : memref<1x8x1xf32, #tpu.memory_space<vmem>>, vector<1x8x1xf32>
      tpu.vector_store %arg4[%c0_11, %c0_12, %c0_13], %26 {strides = array<i32>} : memref<1x8x1xf32, #tpu.memory_space<vmem>>, vector<1x8x1xf32>,
      %c0_14 = arith.constant 0 : index
      %c0_15 = arith.constant 0 : index
      %c0_16 = arith.constant 0 : index
      %38 = vector.load %arg5[%c0_14, %c0_15, %c0_16] : memref<1x8x1xf32, #tpu.memory_space<vmem>>, vector<1x8x1xf32>
      tpu.vector_store %arg5[%c0_14, %c0_15, %c0_16], %30 {strides = array<i32>} : memref<1x8x1xf32, #tpu.memory_space<vmem>>, vector<1x8x1xf32>,
    } else {
    }
    %c0_i32_9 = arith.constant 0 : i32
    %34 = arith.cmpi sgt, %arg1, %c0_i32_9 : i32
    %35 = arith.extui %34 : i1 to i32
    %c0_i32_10 = arith.constant 0 : i32
    %36 = arith.cmpi ne, %35, %c0_i32_10 : i32
    scf.if %36 {
      %c0_11 = arith.constant 0 : index
      %c0_12 = arith.constant 0 : index
      %c0_13 = arith.constant 0 : index
      %37 = vector.load %arg4[%c0_11, %c0_12, %c0_13] : memref<1x8x1xf32, #tpu.memory_space<vmem>>, vector<1x8x1xf32>
      %38 = arith.addf %37, %26 : vector<1x8x1xf32>
      %c0_14 = arith.constant 0 : index
      %c0_15 = arith.constant 0 : index
      %c0_16 = arith.constant 0 : index
      %39 = vector.load %arg4[%c0_14, %c0_15, %c0_16] : memref<1x8x1xf32, #tpu.memory_space<vmem>>, vector<1x8x1xf32>
      tpu.vector_store %arg4[%c0_14, %c0_15, %c0_16], %38 {strides = array<i32>} : memref<1x8x1xf32, #tpu.memory_space<vmem>>, vector<1x8x1xf32>,
      %c0_17 = arith.constant 0 : index
      %c0_18 = arith.constant 0 : index
      %c0_19 = arith.constant 0 : index
      %40 = vector.load %arg5[%c0_17, %c0_18, %c0_19] : memref<1x8x1xf32, #tpu.memory_space<vmem>>, vector<1x8x1xf32>
      %41 = arith.addf %40, %30 : vector<1x8x1xf32>
      %c0_20 = arith.constant 0 : index
      %c0_21 = arith.constant 0 : index
      %c0_22 = arith.constant 0 : index
      %42 = vector.load %arg5[%c0_20, %c0_21, %c0_22] : memref<1x8x1xf32, #tpu.memory_space<vmem>>, vector<1x8x1xf32>
      tpu.vector_store %arg5[%c0_20, %c0_21, %c0_22], %41 {strides = array<i32>} : memref<1x8x1xf32, #tpu.memory_space<vmem>>, vector<1x8x1xf32>,
    } else {
    }
    return
  }
  func.func @transform_0(%arg0: i32, %arg1: i32) -> (i32, i32, i32, i32) {
    %c1_i32 = arith.constant 1 : i32
    %0 = arith.muli %arg0, %c1_i32 : i32
    %1 = arith.addi %0, %arg1 : i32
    %c0_i32 = arith.constant 0 : i32
    %c0_i32_0 = arith.constant 0 : i32
    %c0_i32_1 = arith.constant 0 : i32
    %c0_i32_2 = arith.constant 0 : i32
    return %1, %c0_i32, %c0_i32_0, %c0_i32_1 : i32, i32, i32, i32
  }
  func.func @transform_1(%arg0: i32, %arg1: i32) -> (i32, i32) {
    %c0_i32 = arith.constant 0 : i32
    %c0_i32_0 = arith.constant 0 : i32
    %c0_i32_1 = arith.constant 0 : i32
    return %c0_i32, %c0_i32_0 : i32, i32
  }
  func.func @transform_2(%arg0: i32, %arg1: i32) -> (i32, i32, i32) {
    %c0_i32 = arith.constant 0 : i32
    %c0_i32_0 = arith.constant 0 : i32
    %c0_i32_1 = arith.constant 0 : i32
    return %arg0, %c0_i32, %c0_i32_0 : i32, i32, i32
  }
  func.func @transform_3(%arg0: i32, %arg1: i32) -> (i32, i32, i32) {
    %c0_i32 = arith.constant 0 : i32
    %c0_i32_0 = arith.constant 0 : i32
    %c0_i32_1 = arith.constant 0 : i32
    return %arg0, %c0_i32, %c0_i32_0 : i32, i32, i32
  }
}

</mosaic_0001>

<llo_original>
// kernel: tpu_custom_call.1
$region0: #{tpu_custom_call.1}
  #allocation0 [shape = 'u32[]', space=smem, size = 0x4, offset = 0x4, fixed_abs, tag = 'smem constant byte address 0x4 - core index']
  #allocation1 [shape = 'u32[72,128]{1,0:T(1,128)}', space=vmem, size = 0x9000, scoped, tag = 'internal scratch']
  %s0 = inlined_call_operand.vmem [shape: f32[2,4,18,18], index: 0, kind: input, shape index: {}]
  %s1 = inlined_call_operand.vmem [shape: f32[8,40], index: 1, kind: input, shape index: {}]
  %s2 = inlined_call_operand.vmem [shape: f32[2,8,1], index: 2, kind: output, shape index: {0}]
  %s3 = inlined_call_operand.vmem [shape: f32[2,8,1], index: 3, kind: output, shape index: {1}]
  %4 = xla_tuple %s2, %s3
  %s5 = sld [smem:[#allocation0]]
  $region57: #{tpu_custom_call.1} parent=0
    _
  %s7 = ssub.s32 1, %s5
  %s8 = scalar_select 0, %s7, %s5
  loop: start=0, step=1, limit=4
  $region2: #{tpu_custom_call.1} parent=0 // loop_pre_header
    _
  $region3: #{tpu_custom_call.1} parent=0 // loop_header
    %s10 = sphi 0, %s14
    %p11 = scmp.ge.s32.totalorder %s10, 4
    %s17 = sphi 0, %s29
    %s18 = sphi 0, %s25
    %s19 = sphi 0, %s17
    %s20 = sphi 0, %s18
    %s21 = sphi 0, %s19
    %s22 = sphi 0, %s20
    %s34 = sphi 0, %s36
    %s37 = sphi 0, %s34
    %s38 = sphi 0, %s37
    %s54 = sphi 0, %s38
    %s58 = sphi 0, %s58
    %s60 = sphi 0, %s58
    %s61 = sphi 0, %s60
    %s75 = sphi 0, %s61
    %s81 = sphi 0, %s83
    %s84 = sphi 0, %s81
    %s85 = sphi 0, %s84
    %s101 = sphi 0, %s85
    %s107 = sphi 0, %s109
    %s110 = sphi 0, %s107
    %s111 = sphi 0, %s110
    %s127 = sphi 0, %s111
  $region4: #{tpu_custom_call.1} parent=0 // loop_header_branch
    %13 = sbr.rel (%p11) target = $region8
  $region5: #{tpu_custom_call.1} parent=0 // loop_body
    %s15 = ssub.s32 %s10, 1
    %s16 = ssub.s32 %s10, 2
    %s23 = sadd.s32 1, %s18
    %p24 = scmp.ge.s32.totalorder %s23, 1
    %s25 = scalar_select %p24, 0, %s23
    %s26 = sadd.s32 1, %s17
    %s27 = scalar_select %p24, %s26, %s17
    %p28 = scmp.ge.s32.totalorder %s27, 2
    %s29 = scalar_select %p28, 0, %s27
    %s30 = sadd.s32 %s17, %s18
    %s31 = sadd.s32 %s29, %s25
    %s32 = ssub.s32 %s30, %s31
    %p33 = scmp.eq.s32.totalorder %s32, 0
    %s35 = sadd.s32 %s34, 1
    %s36 = scalar_select %p33, %s34, %s35
    %p39 = pneg %p33
    %p40 = scmp.eq.s32.totalorder %s10, 1
    %p41 = por %p39, %p40
    %p42 = scmp.ne.s32.totalorder %s34, %s37
    %p43 = scmp.eq.s32.totalorder %s10, 0
    %p44 = por %p42, %p43
    %p45 = scmp.ne.s32.totalorder %s34, %s37
    %p46 = scmp.eq.s32.totalorder %s15, 1
    %p47 = por %p45, %p46
    %p48 = scmp.ne.s32.totalorder %s37, %s38
    %p49 = scmp.eq.s32.totalorder %s15, 0
    %p50 = por %p48, %p49
    %p51 = scmp.ne.s32.totalorder %s37, %s38
    %p52 = scmp.eq.s32.totalorder %s16, 1
    %p53 = por %p51, %p52
    %p55 = scmp.ne.s32.totalorder %s38, %s54
    %p56 = scmp.eq.s32.totalorder %s16, 0
    %p57 = por %p55, %p56
    %s59 = sadd.s32 %s58, 1
    %p62 = scmp.eq.s32.totalorder %s10, 1
    %p63 = scmp.ne.s32.totalorder %s58, %s60
    %p64 = scmp.eq.s32.totalorder %s10, 0
    %p65 = por %p63, %p64
    %p66 = scmp.ne.s32.totalorder %s58, %s60
    %p67 = scmp.eq.s32.totalorder %s15, 1
    %p68 = por %p66, %p67
    %p69 = scmp.ne.s32.totalorder %s60, %s61
    %p70 = scmp.eq.s32.totalorder %s15, 0
    %p71 = por %p69, %p70
    %p72 = scmp.ne.s32.totalorder %s60, %s61
    %p73 = scmp.eq.s32.totalorder %s16, 1
    %p74 = por %p72, %p73
    %p76 = scmp.ne.s32.totalorder %s61, %s75
    %p77 = scmp.eq.s32.totalorder %s16, 0
    %p78 = por %p76, %p77
    %s79 = ssub.s32 %s17, %s29
    %p80 = scmp.eq.s32.totalorder %s79, 0
    %s82 = sadd.s32 %s81, 1
    %s83 = scalar_select %p80, %s81, %s82
    %p86 = pneg %p80
    %p87 = scmp.eq.s32.totalorder %s10, 1
    %p88 = por %p86, %p87
    %p89 = scmp.ne.s32.totalorder %s81, %s84
    %p90 = scmp.eq.s32.totalorder %s10, 0
    %p91 = por %p89, %p90
    %p92 = scmp.ne.s32.totalorder %s81, %s84
    %p93 = scmp.eq.s32.totalorder %s15, 1
    %p94 = por %p92, %p93
    %p95 = scmp.ne.s32.totalorder %s84, %s85
    %p96 = scmp.eq.s32.totalorder %s15, 0
    %p97 = por %p95, %p96
    %p98 = scmp.ne.s32.totalorder %s84, %s85
    %p99 = scmp.eq.s32.totalorder %s16, 1
    %p100 = por %p98, %p99
    %p102 = scmp.ne.s32.totalorder %s85, %s101
    %p103 = scmp.eq.s32.totalorder %s16, 0
    %p104 = por %p102, %p103
    %s105 = ssub.s32 %s17, %s29
    %p106 = scmp.eq.s32.totalorder %s105, 0
    %s108 = sadd.s32 %s107, 1
    %s109 = scalar_select %p106, %s107, %s108
    %p112 = pneg %p106
    %p113 = scmp.eq.s32.totalorder %s10, 1
    %p114 = por %p112, %p113
    %p115 = scmp.ne.s32.totalorder %s107, %s110
    %p116 = scmp.eq.s32.totalorder %s10, 0
    %p117 = por %p115, %p116
    %p118 = scmp.ne.s32.totalorder %s107, %s110
    %p119 = scmp.eq.s32.totalorder %s15, 1
    %p120 = por %p118, %p119
    %p121 = scmp.ne.s32.totalorder %s110, %s111
    %p122 = scmp.eq.s32.totalorder %s15, 0
    %p123 = por %p121, %p122
    %p124 = scmp.ne.s32.totalorder %s110, %s111
    %p125 = scmp.eq.s32.totalorder %s16, 1
    %p126 = por %p124, %p125
    %p128 = scmp.ne.s32.totalorder %s111, %s127
    %p129 = scmp.eq.s32.totalorder %s16, 0
    %p130 = por %p128, %p129
    %p131 = scmp.le.s32.totalorder 1, %s10
    %p132 = scmp.lt.s32.totalorder %s10, 3
    %p133 = pnand %p131, %p132
    %p134 = pneg %p133
    // Predicated region
    $region9: #{tpu_custom_call.1} parent=5 // pred_check
      _
    $region10: #{tpu_custom_call.1} parent=5 // pred_check_branch
      %136 = sbr.rel (%p133) target = $region12
    $region11: #{tpu_custom_call.1} parent=5 // pred_region
      %s137 = ssub.s32 %s10, 1
      // Predicated region
      $region13: #{tpu_custom_call.1} parent=11 // pred_check
        %p138 = pneg %p71
      $region14: #{tpu_custom_call.1} parent=11 // pred_check_branch
        %140 = sbr.rel (%p138) target = $region16
      $region15: #{tpu_custom_call.1} parent=11 // pred_region
        _
      $region16: #{tpu_custom_call.1} parent=11 // pred_fallthru
        _
    $region12: #{tpu_custom_call.1} parent=5 // pred_fallthru
      _
    %p141 = scmp.lt.s32.totalorder %s10, 2
    // Predicated region
    $region17: #{tpu_custom_call.1} parent=5 // pred_check
      %p142 = pneg %p141
    $region18: #{tpu_custom_call.1} parent=5 // pred_check_branch
      %144 = sbr.rel (%p142) target = $region20
    $region19: #{tpu_custom_call.1} parent=5 // pred_region
      // Predicated region
      $region21: #{tpu_custom_call.1} parent=19 // pred_check
        %p145 = pneg %p44
      $region22: #{tpu_custom_call.1} parent=19 // pred_check_branch
        %147 = sbr.rel (%p145) target = $region24
      $region23: #{tpu_custom_call.1} parent=19 // pred_region
        %s148 = sadd.s32 %s17, %s18
        %p149 = scmp.lt.s32.totalorder %s148, 1
        %s150 = scalar_select %p149, %s148, 1
        %s151 = smul.addr %s150, 12
        %s152 = smul.addr %s151, 8
        %s153 = scalar_lea.vmem %s0, %s152
        %s154 = sadd.s32 %s17, %s18
      $region24: #{tpu_custom_call.1} parent=19 // pred_fallthru
        _
    $region20: #{tpu_custom_call.1} parent=5 // pred_fallthru
      _
    %p155 = scmp.le.s32.totalorder 1, %s10
    %p156 = scmp.lt.s32.totalorder %s10, 3
    %p157 = pnand %p155, %p156
    %p158 = pneg %p157
    // Predicated region
    $region25: #{tpu_custom_call.1} parent=5 // pred_check
      _
    $region26: #{tpu_custom_call.1} parent=5 // pred_check_branch
      %160 = sbr.rel (%p157) target = $region28
    $region27: #{tpu_custom_call.1} parent=5 // pred_region
      %s161 = ssub.s32 %s10, 1
      %s162 = sadd.s32 %s19, %s20
      %p163 = scmp.lt.s32.totalorder %s162, 1
      %s164 = scalar_select %p163, %s162, 1
      %s165 = smul.addr %s164, 12
      %s166 = smul.addr %s165, 8
      %s167 = scalar_lea.vmem %s0, %s166
      %p168 = pneg %p50
      %p169 = pneg %p47
      %p170 = pneg %p71
      %p171 = pneg %p68
      %p172 = pneg %p97
      %p173 = pneg %p94
      %p174 = scmp.lt.s32.totalorder %s19, 1
      %s175 = scalar_select %p174, %s19, 1
      %s176 = smul.addr %s175, 8
      %s177 = scalar_lea.vmem %s2, %s176
      %p178 = pneg %p123
      %p179 = pneg %p120
      %p180 = scmp.lt.s32.totalorder %s19, 1
      %s181 = scalar_select %p180, %s19, 1
      %s182 = smul.addr %s181, 8
      %s183 = scalar_lea.vmem %s3, %s182
      %s184 = sadd.s32 %s19, %s20
      %p185 = scmp.lt.s32.totalorder %s184, 1
      %s186 = scalar_select %p185, %s184, 1
      %s187 = smul.addr %s186, 12
      %s188 = smul.addr %s187, 8
      %s189 = scalar_lea.vmem %s0, %s188
      %s190 = sadd.s32 %s19, %s20
      %p191 = scmp.lt.s32.totalorder %s19, 1
      %s192 = scalar_select %p191, %s19, 1
      %s193 = smul.addr %s192, 8
      %s194 = scalar_lea.vmem %s2, %s193
      %p195 = scmp.lt.s32.totalorder %s19, 1
      %s196 = scalar_select %p195, %s19, 1
      %s197 = smul.addr %s196, 8
      %s198 = scalar_lea.vmem %s3, %s197
      %v199 = vld [vmem:[%s189] sm:$0xff]
      %v200 = vld [vmem:[%s189 + $0x8] sm:$0xff]
      %v201 = vld [vmem:[%s189 + $0x10] sm:$0x3]
      %v202 = vld [vmem:[%s189 + $0x18] sm:$0xff]
      %v203 = vld [vmem:[%s189 + $0x20] sm:$0xff]
      %v204 = vld [vmem:[%s189 + $0x28] sm:$0x3]
      %v205 = vld [vmem:[%s189 + $0x30] sm:$0xff]
      %v206 = vld [vmem:[%s189 + $0x38] sm:$0xff]
      %v207 = vld [vmem:[%s189 + $0x40] sm:$0x3]
      %v208 = vld [vmem:[%s189 + $0x48] sm:$0xff]
      %v209 = vld [vmem:[%s189 + $0x50] sm:$0xff]
      %v210 = vld [vmem:[%s189 + $0x58] sm:$0x3]
      %v211 = vrot.slane %v205, 4
      %vm212 = vcmask 1047556
      %v213 = vsel %vm212, %v211, %v199
      %v214 = vrot.slane %v199, 4
      %v215 = vsel %vm212, %v205, %v214
      %v217 = vunpack.c.l.s4 1983009808
      %v218 = vunpack.c.0.s8 %v217
      %v219 = vperm.slane %v213, %v218
      %v221 = vunpack.c.l.s4 1983009808
      %v222 = vunpack.c.0.s8 %v221
      %v223 = vperm.slane %v215, %v222
      %v224 = vrot.slane %v208, 4
      %v225 = vsel %vm212, %v224, %v202
      %v226 = vrot.slane %v202, 4
      %v227 = vsel %vm212, %v208, %v226
      %v229 = vunpack.c.l.s4 1983009808
      %v230 = vunpack.c.0.s8 %v229
      %v231 = vperm.slane %v225, %v230
      %v233 = vunpack.c.l.s4 1983009808
      %v234 = vunpack.c.0.s8 %v233
      %v235 = vperm.slane %v227, %v234
      %v236 = vrot.slane %v231, 4
      %v237 = vsel %vm212, %v236, %v219
      %v238 = vrot.slane %v219, 4
      %v239 = vsel %vm212, %v231, %v238
      %v241 = vunpack.c.l.s4 1934713408
      %v242 = vunpack.c.0.s8 %v241
      %v243 = vperm.slane %v237, %v242
      %v245 = vunpack.c.l.s4 1934713408
      %v246 = vunpack.c.0.s8 %v245
      %v247 = vperm.slane %v239, %v246
      %v248 = vrot.slane %v235, 4
      %v249 = vsel %vm212, %v248, %v223
      %v250 = vrot.slane %v223, 4
      %v251 = vsel %vm212, %v235, %v250
      %v253 = vunpack.c.l.s4 1934713408
      %v254 = vunpack.c.0.s8 %v253
      %v255 = vperm.slane %v249, %v254
      %v257 = vunpack.c.l.s4 1934713408
      %v258 = vunpack.c.0.s8 %v257
      %v259 = vperm.slane %v251, %v258
      %v260 = vrot.slane %v243, 4
      %v261 = vsel %vm212, 0.0, %v260
      %v262 = vrot.slane %v247, 4
      %v263 = vsel %vm212, 0.0, %v262
      %v264 = vrot.slane %v255, 4
      %v265 = vsel %vm212, 0.0, %v264
      %v266 = vrot.slane %v259, 4
      %v267 = vsel %vm212, 0.0, %v266
      %v268 = vrot.slane %v206, 4
      %v269 = vsel %vm212, %v268, %v200
      %v270 = vrot.slane %v200, 4
      %v271 = vsel %vm212, %v206, %v270
      %v273 = vunpack.c.l.s4 1983009808
      %v274 = vunpack.c.0.s8 %v273
      %v275 = vperm.slane %v269, %v274
      %v277 = vunpack.c.l.s4 1983009808
      %v278 = vunpack.c.0.s8 %v277
      %v279 = vperm.slane %v271, %v278
      %v280 = vrot.slane %v209, 4
      %v281 = vsel %vm212, %v280, %v203
      %v282 = vrot.slane %v203, 4
      %v283 = vsel %vm212, %v209, %v282
      %v285 = vunpack.c.l.s4 1983009808
      %v286 = vunpack.c.0.s8 %v285
      %v287 = vperm.slane %v281, %v286
      %v289 = vunpack.c.l.s4 1983009808
      %v290 = vunpack.c.0.s8 %v289
      %v291 = vperm.slane %v283, %v290
      %v292 = vrot.slane %v287, 4
      %v293 = vsel %vm212, %v292, %v275
      %v294 = vrot.slane %v275, 4
      %v295 = vsel %vm212, %v287, %v294
      %v297 = vunpack.c.l.s4 1934713408
      %v298 = vunpack.c.0.s8 %v297
      %v299 = vperm.slane %v293, %v298
      %v301 = vunpack.c.l.s4 1934713408
      %v302 = vunpack.c.0.s8 %v301
      %v303 = vperm.slane %v295, %v302
      %v304 = vrot.slane %v291, 4
      %v305 = vsel %vm212, %v304, %v279
      %v306 = vrot.slane %v279, 4
      %v307 = vsel %vm212, %v291, %v306
      %v309 = vunpack.c.l.s4 1934713408
      %v310 = vunpack.c.0.s8 %v309
      %v311 = vperm.slane %v305, %v310
      %v313 = vunpack.c.l.s4 1934713408
      %v314 = vunpack.c.0.s8 %v313
      %v315 = vperm.slane %v307, %v314
      %v316 = vrot.slane %v299, 4
      %v317 = vsel %vm212, 0.0, %v316
      %v318 = vrot.slane %v303, 4
      %v319 = vsel %vm212, 0.0, %v318
      %v320 = vrot.slane %v311, 4
      %v321 = vsel %vm212, 0.0, %v320
      %v322 = vrot.slane %v315, 4
      %v323 = vsel %vm212, 0.0, %v322
      %325 = vrot.lane.b32.xlu0 %v261, 16
      %v326 = vpop.permute.xlu0 %325
      %329 = vrot.lane.b32.xlu0 %v247, 32
      %v330 = vpop.permute.xlu0 %329
      %333 = vrot.lane.b32.xlu0 %v263, 48
      %v334 = vpop.permute.xlu0 %333
      %337 = vrot.lane.b32.xlu0 %v255, 64
      %v338 = vpop.permute.xlu0 %337
      %341 = vrot.lane.b32.xlu0 %v265, 80
      %v342 = vpop.permute.xlu0 %341
      %345 = vrot.lane.b32.xlu0 %v259, 96
      %v346 = vpop.permute.xlu0 %345
      %349 = vrot.lane.b32.xlu0 %v267, 112
      %v350 = vpop.permute.xlu0 %349
      %353 = vrot.lane.b32.xlu0 %v317, 16
      %v354 = vpop.permute.xlu0 %353
      %357 = vrot.lane.b32.xlu0 %v303, 32
      %v358 = vpop.permute.xlu0 %357
      %361 = vrot.lane.b32.xlu0 %v319, 48
      %v362 = vpop.permute.xlu0 %361
      %365 = vrot.lane.b32.xlu0 %v311, 64
      %v366 = vpop.permute.xlu0 %365
      %369 = vrot.lane.b32.xlu0 %v321, 80
      %v370 = vpop.permute.xlu0 %369
      %373 = vrot.lane.b32.xlu0 %v315, 96
      %v374 = vpop.permute.xlu0 %373
      %377 = vrot.lane.b32.xlu0 %v323, 112
      %v378 = vpop.permute.xlu0 %377
      %vm380 = vcmask 130048
      %v381 = vsel %vm380, %v243, %v326
      %vm382 = vcmask 261120
      %v383 = vsel %vm382, %v381, %v330
      %vm384 = vcmask 392192
      %v385 = vsel %vm384, %v383, %v334
      %vm386 = vcmask 523264
      %v387 = vsel %vm386, %v385, %v338
      %vm388 = vcmask 654336
      %v389 = vsel %vm388, %v387, %v342
      %vm390 = vcmask 785408
      %v391 = vsel %vm390, %v389, %v346
      %vm392 = vcmask 916480
      %v393 = vsel %vm392, %v391, %v350
      %v394 = vsel %vm380, %v299, %v354
      %v395 = vsel %vm382, %v394, %v358
      %v396 = vsel %vm384, %v395, %v362
      %v397 = vsel %vm386, %v396, %v366
      %v398 = vsel %vm388, %v397, %v370
      %v399 = vsel %vm390, %v398, %v374
      %v400 = vsel %vm392, %v399, %v378
      %409 = vrot.lane.b32.xlu0 %v199, 127
      %v410 = vpop.permute.xlu0 %409
      %411 = vrot.lane.b32.xlu0 %v200, 127
      %v412 = vpop.permute.xlu0 %411
      %413 = vrot.lane.b32.xlu0 %v202, 127
      %v414 = vpop.permute.xlu0 %413
      %415 = vrot.lane.b32.xlu0 %v203, 127
      %v416 = vpop.permute.xlu0 %415
      %417 = vrot.lane.b32.xlu0 %v205, 127
      %v418 = vpop.permute.xlu0 %417
      %419 = vrot.lane.b32.xlu0 %v206, 127
      %v420 = vpop.permute.xlu0 %419
      %421 = vrot.lane.b32.xlu0 %v208, 127
      %v422 = vpop.permute.xlu0 %421
      %423 = vrot.lane.b32.xlu0 %v209, 127
      %v424 = vpop.permute.xlu0 %423
      %v433 = vrot.slane %v418, 4
      %v434 = vsel %vm212, %v433, %v410
      %v435 = vrot.slane %v410, 4
      %v436 = vsel %vm212, %v418, %v435
      %v438 = vunpack.c.l.s4 1983009808
      %v439 = vunpack.c.0.s8 %v438
      %v440 = vperm.slane %v434, %v439
      %v442 = vunpack.c.l.s4 1983009808
      %v443 = vunpack.c.0.s8 %v442
      %v444 = vperm.slane %v436, %v443
      %v445 = vrot.slane %v422, 4
      %v446 = vsel %vm212, %v445, %v414
      %v447 = vrot.slane %v414, 4
      %v448 = vsel %vm212, %v422, %v447
      %v450 = vunpack.c.l.s4 1983009808
      %v451 = vunpack.c.0.s8 %v450
      %v452 = vperm.slane %v446, %v451
      %v454 = vunpack.c.l.s4 1983009808
      %v455 = vunpack.c.0.s8 %v454
      %v456 = vperm.slane %v448, %v455
      %v457 = vrot.slane %v452, 4
      %v458 = vsel %vm212, %v457, %v440
      %v459 = vrot.slane %v440, 4
      %v460 = vsel %vm212, %v452, %v459
      %v462 = vunpack.c.l.s4 1934713408
      %v463 = vunpack.c.0.s8 %v462
      %v464 = vperm.slane %v458, %v463
      %v466 = vunpack.c.l.s4 1934713408
      %v467 = vunpack.c.0.s8 %v466
      %v468 = vperm.slane %v460, %v467
      %v469 = vrot.slane %v456, 4
      %v470 = vsel %vm212, %v469, %v444
      %v471 = vrot.slane %v444, 4
      %v472 = vsel %vm212, %v456, %v471
      %v474 = vunpack.c.l.s4 1934713408
      %v475 = vunpack.c.0.s8 %v474
      %v476 = vperm.slane %v470, %v475
      %v478 = vunpack.c.l.s4 1934713408
      %v479 = vunpack.c.0.s8 %v478
      %v480 = vperm.slane %v472, %v479
      %v481 = vrot.slane %v464, 4
      %v482 = vsel %vm212, 0.0, %v481
      %v483 = vrot.slane %v468, 4
      %v484 = vsel %vm212, 0.0, %v483
      %v485 = vrot.slane %v476, 4
      %v486 = vsel %vm212, 0.0, %v485
      %v487 = vrot.slane %v480, 4
      %v488 = vsel %vm212, 0.0, %v487
      %v489 = vrot.slane %v420, 4
      %v490 = vsel %vm212, %v489, %v412
      %v491 = vrot.slane %v412, 4
      %v492 = vsel %vm212, %v420, %v491
      %v494 = vunpack.c.l.s4 1983009808
      %v495 = vunpack.c.0.s8 %v494
      %v496 = vperm.slane %v490, %v495
      %v498 = vunpack.c.l.s4 1983009808
      %v499 = vunpack.c.0.s8 %v498
      %v500 = vperm.slane %v492, %v499
      %v501 = vrot.slane %v424, 4
      %v502 = vsel %vm212, %v501, %v416
      %v503 = vrot.slane %v416, 4
      %v504 = vsel %vm212, %v424, %v503
      %v506 = vunpack.c.l.s4 1983009808
      %v507 = vunpack.c.0.s8 %v506
      %v508 = vperm.slane %v502, %v507
      %v510 = vunpack.c.l.s4 1983009808
      %v511 = vunpack.c.0.s8 %v510
      %v512 = vperm.slane %v504, %v511
      %v513 = vrot.slane %v508, 4
      %v514 = vsel %vm212, %v513, %v496
      %v515 = vrot.slane %v496, 4
      %v516 = vsel %vm212, %v508, %v515
      %v518 = vunpack.c.l.s4 1934713408
      %v519 = vunpack.c.0.s8 %v518
      %v520 = vperm.slane %v514, %v519
      %v522 = vunpack.c.l.s4 1934713408
      %v523 = vunpack.c.0.s8 %v522
      %v524 = vperm.slane %v516, %v523
      %v525 = vrot.slane %v512, 4
      %v526 = vsel %vm212, %v525, %v500
      %v527 = vrot.slane %v500, 4
      %v528 = vsel %vm212, %v512, %v527
      %v530 = vunpack.c.l.s4 1934713408
      %v531 = vunpack.c.0.s8 %v530
      %v532 = vperm.slane %v526, %v531
      %v534 = vunpack.c.l.s4 1934713408
      %v535 = vunpack.c.0.s8 %v534
      %v536 = vperm.slane %v528, %v535
      %v537 = vrot.slane %v520, 4
      %v538 = vsel %vm212, 0.0, %v537
      %v539 = vrot.slane %v524, 4
      %v540 = vsel %vm212, 0.0, %v539
      %v541 = vrot.slane %v532, 4
      %v542 = vsel %vm212, 0.0, %v541
      %v543 = vrot.slane %v536, 4
      %v544 = vsel %vm212, 0.0, %v543
      %546 = vrot.lane.b32.xlu0 %v482, 16
      %v547 = vpop.permute.xlu0 %546
      %550 = vrot.lane.b32.xlu0 %v468, 32
      %v551 = vpop.permute.xlu0 %550
      %554 = vrot.lane.b32.xlu0 %v484, 48
      %v555 = vpop.permute.xlu0 %554
      %558 = vrot.lane.b32.xlu0 %v476, 64
      %v559 = vpop.permute.xlu0 %558
      %562 = vrot.lane.b32.xlu0 %v486, 80
      %v563 = vpop.permute.xlu0 %562
      %566 = vrot.lane.b32.xlu0 %v480, 96
      %v567 = vpop.permute.xlu0 %566
      %570 = vrot.lane.b32.xlu0 %v488, 112
      %v571 = vpop.permute.xlu0 %570
      %574 = vrot.lane.b32.xlu0 %v538, 16
      %v575 = vpop.permute.xlu0 %574
      %578 = vrot.lane.b32.xlu0 %v524, 32
      %v579 = vpop.permute.xlu0 %578
      %582 = vrot.lane.b32.xlu0 %v540, 48
      %v583 = vpop.permute.xlu0 %582
      %586 = vrot.lane.b32.xlu0 %v532, 64
      %v587 = vpop.permute.xlu0 %586
      %590 = vrot.lane.b32.xlu0 %v542, 80
      %v591 = vpop.permute.xlu0 %590
      %594 = vrot.lane.b32.xlu0 %v536, 96
      %v595 = vpop.permute.xlu0 %594
      %598 = vrot.lane.b32.xlu0 %v544, 112
      %v599 = vpop.permute.xlu0 %598
      %v601 = vsel %vm380, %v464, %v547
      %v602 = vsel %vm382, %v601, %v551
      %v603 = vsel %vm384, %v602, %v555
      %v604 = vsel %vm386, %v603, %v559
      %v605 = vsel %vm388, %v604, %v563
      %v606 = vsel %vm390, %v605, %v567
      %v607 = vsel %vm392, %v606, %v571
      %v608 = vsel %vm380, %v520, %v575
      %v609 = vsel %vm382, %v608, %v579
      %v610 = vsel %vm384, %v609, %v583
      %v611 = vsel %vm386, %v610, %v587
      %v612 = vsel %vm388, %v611, %v591
      %v613 = vsel %vm390, %v612, %v595
      %v614 = vsel %vm392, %v613, %v599
      %615 = vrot.lane.b32.xlu0 %v199, 126
      %v616 = vpop.permute.xlu0 %615
      %617 = vrot.lane.b32.xlu0 %v200, 126
      %v618 = vpop.permute.xlu0 %617
      %619 = vrot.lane.b32.xlu0 %v202, 126
      %v620 = vpop.permute.xlu0 %619
      %621 = vrot.lane.b32.xlu0 %v203, 126
      %v622 = vpop.permute.xlu0 %621
      %623 = vrot.lane.b32.xlu0 %v205, 126
      %v624 = vpop.permute.xlu0 %623
      %625 = vrot.lane.b32.xlu0 %v206, 126
      %v626 = vpop.permute.xlu0 %625
      %627 = vrot.lane.b32.xlu0 %v208, 126
      %v628 = vpop.permute.xlu0 %627
      %629 = vrot.lane.b32.xlu0 %v209, 126
      %v630 = vpop.permute.xlu0 %629
      %v639 = vrot.slane %v624, 4
      %v640 = vsel %vm212, %v639, %v616
      %v641 = vrot.slane %v616, 4
      %v642 = vsel %vm212, %v624, %v641
      %v644 = vunpack.c.l.s4 1983009808
      %v645 = vunpack.c.0.s8 %v644
      %v646 = vperm.slane %v640, %v645
      %v648 = vunpack.c.l.s4 1983009808
      %v649 = vunpack.c.0.s8 %v648
      %v650 = vperm.slane %v642, %v649
      %v651 = vrot.slane %v628, 4
      %v652 = vsel %vm212, %v651, %v620
      %v653 = vrot.slane %v620, 4
      %v654 = vsel %vm212, %v628, %v653
      %v656 = vunpack.c.l.s4 1983009808
      %v657 = vunpack.c.0.s8 %v656
      %v658 = vperm.slane %v652, %v657
      %v660 = vunpack.c.l.s4 1983009808
      %v661 = vunpack.c.0.s8 %v660
      %v662 = vperm.slane %v654, %v661
      %v663 = vrot.slane %v658, 4
      %v664 = vsel %vm212, %v663, %v646
      %v665 = vrot.slane %v646, 4
      %v666 = vsel %vm212, %v658, %v665
      %v668 = vunpack.c.l.s4 1934713408
      %v669 = vunpack.c.0.s8 %v668
      %v670 = vperm.slane %v664, %v669
      %v672 = vunpack.c.l.s4 1934713408
      %v673 = vunpack.c.0.s8 %v672
      %v674 = vperm.slane %v666, %v673
      %v675 = vrot.slane %v662, 4
      %v676 = vsel %vm212, %v675, %v650
      %v677 = vrot.slane %v650, 4
      %v678 = vsel %vm212, %v662, %v677
      %v680 = vunpack.c.l.s4 1934713408
      %v681 = vunpack.c.0.s8 %v680
      %v682 = vperm.slane %v676, %v681
      %v684 = vunpack.c.l.s4 1934713408
      %v685 = vunpack.c.0.s8 %v684
      %v686 = vperm.slane %v678, %v685
      %v687 = vrot.slane %v670, 4
      %v688 = vsel %vm212, 0.0, %v687
      %v689 = vrot.slane %v674, 4
      %v690 = vsel %vm212, 0.0, %v689
      %v691 = vrot.slane %v682, 4
      %v692 = vsel %vm212, 0.0, %v691
      %v693 = vrot.slane %v686, 4
      %v694 = vsel %vm212, 0.0, %v693
      %v695 = vrot.slane %v626, 4
      %v696 = vsel %vm212, %v695, %v618
      %v697 = vrot.slane %v618, 4
      %v698 = vsel %vm212, %v626, %v697
      %v700 = vunpack.c.l.s4 1983009808
      %v701 = vunpack.c.0.s8 %v700
      %v702 = vperm.slane %v696, %v701
      %v704 = vunpack.c.l.s4 1983009808
      %v705 = vunpack.c.0.s8 %v704
      %v706 = vperm.slane %v698, %v705
      %v707 = vrot.slane %v630, 4
      %v708 = vsel %vm212, %v707, %v622
      %v709 = vrot.slane %v622, 4
      %v710 = vsel %vm212, %v630, %v709
      %v712 = vunpack.c.l.s4 1983009808
      %v713 = vunpack.c.0.s8 %v712
      %v714 = vperm.slane %v708, %v713
      %v716 = vunpack.c.l.s4 1983009808
      %v717 = vunpack.c.0.s8 %v716
      %v718 = vperm.slane %v710, %v717
      %v719 = vrot.slane %v714, 4
      %v720 = vsel %vm212, %v719, %v702
      %v721 = vrot.slane %v702, 4
      %v722 = vsel %vm212, %v714, %v721
      %v724 = vunpack.c.l.s4 1934713408
      %v725 = vunpack.c.0.s8 %v724
      %v726 = vperm.slane %v720, %v725
      %v728 = vunpack.c.l.s4 1934713408
      %v729 = vunpack.c.0.s8 %v728
      %v730 = vperm.slane %v722, %v729
      %v731 = vrot.slane %v718, 4
      %v732 = vsel %vm212, %v731, %v706
      %v733 = vrot.slane %v706, 4
      %v734 = vsel %vm212, %v718, %v733
      %v736 = vunpack.c.l.s4 1934713408
      %v737 = vunpack.c.0.s8 %v736
      %v738 = vperm.slane %v732, %v737
      %v740 = vunpack.c.l.s4 1934713408
      %v741 = vunpack.c.0.s8 %v740
      %v742 = vperm.slane %v734, %v741
      %v743 = vrot.slane %v726, 4
      %v744 = vsel %vm212, 0.0, %v743
      %v745 = vrot.slane %v730, 4
      %v746 = vsel %vm212, 0.0, %v745
      %v747 = vrot.slane %v738, 4
      %v748 = vsel %vm212, 0.0, %v747
      %v749 = vrot.slane %v742, 4
      %v750 = vsel %vm212, 0.0, %v749
      %752 = vrot.lane.b32.xlu0 %v688, 16
      %v753 = vpop.permute.xlu0 %752
      %756 = vrot.lane.b32.xlu0 %v674, 32
      %v757 = vpop.permute.xlu0 %756
      %760 = vrot.lane.b32.xlu0 %v690, 48
      %v761 = vpop.permute.xlu0 %760
      %764 = vrot.lane.b32.xlu0 %v682, 64
      %v765 = vpop.permute.xlu0 %764
      %768 = vrot.lane.b32.xlu0 %v692, 80
      %v769 = vpop.permute.xlu0 %768
      %772 = vrot.lane.b32.xlu0 %v686, 96
      %v773 = vpop.permute.xlu0 %772
      %776 = vrot.lane.b32.xlu0 %v694, 112
      %v777 = vpop.permute.xlu0 %776
      %780 = vrot.lane.b32.xlu0 %v744, 16
      %v781 = vpop.permute.xlu0 %780
      %784 = vrot.lane.b32.xlu0 %v730, 32
      %v785 = vpop.permute.xlu0 %784
      %788 = vrot.lane.b32.xlu0 %v746, 48
      %v789 = vpop.permute.xlu0 %788
      %792 = vrot.lane.b32.xlu0 %v738, 64
      %v793 = vpop.permute.xlu0 %792
      %796 = vrot.lane.b32.xlu0 %v748, 80
      %v797 = vpop.permute.xlu0 %796
      %800 = vrot.lane.b32.xlu0 %v742, 96
      %v801 = vpop.permute.xlu0 %800
      %804 = vrot.lane.b32.xlu0 %v750, 112
      %v805 = vpop.permute.xlu0 %804
      %v807 = vsel %vm380, %v670, %v753
      %v808 = vsel %vm382, %v807, %v757
      %v809 = vsel %vm384, %v808, %v761
      %v810 = vsel %vm386, %v809, %v765
      %v811 = vsel %vm388, %v810, %v769
      %v812 = vsel %vm390, %v811, %v773
      %v813 = vsel %vm392, %v812, %v777
      %v814 = vsel %vm380, %v726, %v781
      %v815 = vsel %vm382, %v814, %v785
      %v816 = vsel %vm384, %v815, %v789
      %v817 = vsel %vm386, %v816, %v793
      %v818 = vsel %vm388, %v817, %v797
      %v819 = vsel %vm390, %v818, %v801
      %v820 = vsel %vm392, %v819, %v805
      %vm825 = vcmask 1046528
      %v826 = vrot.slane %v199, 1
      %v827 = vrot.slane %v200, 1
      %v828 = vsel %vm825, %v826, %v827
      %v829 = vrot.slane %v201, 1
      %v830 = vsel %vm825, %v827, %v829
      %v831 = vrot.slane %v202, 1
      %v832 = vrot.slane %v203, 1
      %v833 = vsel %vm825, %v831, %v832
      %v834 = vrot.slane %v204, 1
      %v835 = vsel %vm825, %v832, %v834
      %v836 = vrot.slane %v205, 1
      %v837 = vrot.slane %v206, 1
      %v838 = vsel %vm825, %v836, %v837
      %v839 = vrot.slane %v207, 1
      %v840 = vsel %vm825, %v837, %v839
      %v841 = vrot.slane %v208, 1
      %v842 = vrot.slane %v209, 1
      %v843 = vsel %vm825, %v841, %v842
      %v844 = vrot.slane %v210, 1
      %v845 = vsel %vm825, %v842, %v844
      %v854 = vrot.slane %v838, 4
      %v855 = vsel %vm212, %v854, %v828
      %v856 = vrot.slane %v828, 4
      %v857 = vsel %vm212, %v838, %v856
      %v859 = vunpack.c.l.s4 1983009808
      %v860 = vunpack.c.0.s8 %v859
      %v861 = vperm.slane %v855, %v860
      %v863 = vunpack.c.l.s4 1983009808
      %v864 = vunpack.c.0.s8 %v863
      %v865 = vperm.slane %v857, %v864
      %v866 = vrot.slane %v843, 4
      %v867 = vsel %vm212, %v866, %v833
      %v868 = vrot.slane %v833, 4
      %v869 = vsel %vm212, %v843, %v868
      %v871 = vunpack.c.l.s4 1983009808
      %v872 = vunpack.c.0.s8 %v871
      %v873 = vperm.slane %v867, %v872
      %v875 = vunpack.c.l.s4 1983009808
      %v876 = vunpack.c.0.s8 %v875
      %v877 = vperm.slane %v869, %v876
      %v878 = vrot.slane %v873, 4
      %v879 = vsel %vm212, %v878, %v861
      %v880 = vrot.slane %v861, 4
      %v881 = vsel %vm212, %v873, %v880
      %v883 = vunpack.c.l.s4 1934713408
      %v884 = vunpack.c.0.s8 %v883
      %v885 = vperm.slane %v879, %v884
      %v887 = vunpack.c.l.s4 1934713408
      %v888 = vunpack.c.0.s8 %v887
      %v889 = vperm.slane %v881, %v888
      %v890 = vrot.slane %v877, 4
      %v891 = vsel %vm212, %v890, %v865
      %v892 = vrot.slane %v865, 4
      %v893 = vsel %vm212, %v877, %v892
      %v895 = vunpack.c.l.s4 1934713408
      %v896 = vunpack.c.0.s8 %v895
      %v897 = vperm.slane %v891, %v896
      %v899 = vunpack.c.l.s4 1934713408
      %v900 = vunpack.c.0.s8 %v899
      %v901 = vperm.slane %v893, %v900
      %v902 = vrot.slane %v885, 4
      %v903 = vsel %vm212, 0.0, %v902
      %v904 = vrot.slane %v889, 4
      %v905 = vsel %vm212, 0.0, %v904
      %v906 = vrot.slane %v897, 4
      %v907 = vsel %vm212, 0.0, %v906
      %v908 = vrot.slane %v901, 4
      %v909 = vsel %vm212, 0.0, %v908
      %v910 = vrot.slane %v840, 4
      %v911 = vsel %vm212, %v910, %v830
      %v912 = vrot.slane %v830, 4
      %v913 = vsel %vm212, %v840, %v912
      %v915 = vunpack.c.l.s4 1983009808
      %v916 = vunpack.c.0.s8 %v915
      %v917 = vperm.slane %v911, %v916
      %v919 = vunpack.c.l.s4 1983009808
      %v920 = vunpack.c.0.s8 %v919
      %v921 = vperm.slane %v913, %v920
      %v922 = vrot.slane %v845, 4
      %v923 = vsel %vm212, %v922, %v835
      %v924 = vrot.slane %v835, 4
      %v925 = vsel %vm212, %v845, %v924
      %v927 = vunpack.c.l.s4 1983009808
      %v928 = vunpack.c.0.s8 %v927
      %v929 = vperm.slane %v923, %v928
      %v931 = vunpack.c.l.s4 1983009808
      %v932 = vunpack.c.0.s8 %v931
      %v933 = vperm.slane %v925, %v932
      %v934 = vrot.slane %v929, 4
      %v935 = vsel %vm212, %v934, %v917
      %v936 = vrot.slane %v917, 4
      %v937 = vsel %vm212, %v929, %v936
      %v939 = vunpack.c.l.s4 1934713408
      %v940 = vunpack.c.0.s8 %v939
      %v941 = vperm.slane %v935, %v940
      %v943 = vunpack.c.l.s4 1934713408
      %v944 = vunpack.c.0.s8 %v943
      %v945 = vperm.slane %v937, %v944
      %v946 = vrot.slane %v933, 4
      %v947 = vsel %vm212, %v946, %v921
      %v948 = vrot.slane %v921, 4
      %v949 = vsel %vm212, %v933, %v948
      %v951 = vunpack.c.l.s4 1934713408
      %v952 = vunpack.c.0.s8 %v951
      %v953 = vperm.slane %v947, %v952
      %v955 = vunpack.c.l.s4 1934713408
      %v956 = vunpack.c.0.s8 %v955
      %v957 = vperm.slane %v949, %v956
      %v958 = vrot.slane %v941, 4
      %v959 = vsel %vm212, 0.0, %v958
      %v960 = vrot.slane %v945, 4
      %v961 = vsel %vm212, 0.0, %v960
      %v962 = vrot.slane %v953, 4
      %v963 = vsel %vm212, 0.0, %v962
      %v964 = vrot.slane %v957, 4
      %v965 = vsel %vm212, 0.0, %v964
      %967 = vrot.lane.b32.xlu0 %v903, 16
      %v968 = vpop.permute.xlu0 %967
      %971 = vrot.lane.b32.xlu0 %v889, 32
      %v972 = vpop.permute.xlu0 %971
      %975 = vrot.lane.b32.xlu0 %v905, 48
      %v976 = vpop.permute.xlu0 %975
      %979 = vrot.lane.b32.xlu0 %v897, 64
      %v980 = vpop.permute.xlu0 %979
      %983 = vrot.lane.b32.xlu0 %v907, 80
      %v984 = vpop.permute.xlu0 %983
      %987 = vrot.lane.b32.xlu0 %v901, 96
      %v988 = vpop.permute.xlu0 %987
      %991 = vrot.lane.b32.xlu0 %v909, 112
      %v992 = vpop.permute.xlu0 %991
      %995 = vrot.lane.b32.xlu0 %v959, 16
      %v996 = vpop.permute.xlu0 %995
      %999 = vrot.lane.b32.xlu0 %v945, 32
      %v1000 = vpop.permute.xlu0 %999
      %1003 = vrot.lane.b32.xlu0 %v961, 48
      %v1004 = vpop.permute.xlu0 %1003
      %1007 = vrot.lane.b32.xlu0 %v953, 64
      %v1008 = vpop.permute.xlu0 %1007
      %1011 = vrot.lane.b32.xlu0 %v963, 80
      %v1012 = vpop.permute.xlu0 %1011
      %1015 = vrot.lane.b32.xlu0 %v957, 96
      %v1016 = vpop.permute.xlu0 %1015
      %1019 = vrot.lane.b32.xlu0 %v965, 112
      %v1020 = vpop.permute.xlu0 %1019
      %v1022 = vsel %vm380, %v885, %v968
      %v1023 = vsel %vm382, %v1022, %v972
      %v1024 = vsel %vm384, %v1023, %v976
      %v1025 = vsel %vm386, %v1024, %v980
      %v1026 = vsel %vm388, %v1025, %v984
      %v1027 = vsel %vm390, %v1026, %v988
      %v1028 = vsel %vm392, %v1027, %v992
      %v1029 = vsel %vm380, %v941, %v996
      %v1030 = vsel %vm382, %v1029, %v1000
      %v1031 = vsel %vm384, %v1030, %v1004
      %v1032 = vsel %vm386, %v1031, %v1008
      %v1033 = vsel %vm388, %v1032, %v1012
      %v1034 = vsel %vm390, %v1033, %v1016
      %v1035 = vsel %vm392, %v1034, %v1020
      %1036 = vrot.lane.b32.xlu0 %v828, 127
      %v1037 = vpop.permute.xlu0 %1036
      %1038 = vrot.lane.b32.xlu0 %v830, 127
      %v1039 = vpop.permute.xlu0 %1038
      %1040 = vrot.lane.b32.xlu0 %v833, 127
      %v1041 = vpop.permute.xlu0 %1040
      %1042 = vrot.lane.b32.xlu0 %v835, 127
      %v1043 = vpop.permute.xlu0 %1042
      %1044 = vrot.lane.b32.xlu0 %v838, 127
      %v1045 = vpop.permute.xlu0 %1044
      %1046 = vrot.lane.b32.xlu0 %v840, 127
      %v1047 = vpop.permute.xlu0 %1046
      %1048 = vrot.lane.b32.xlu0 %v843, 127
      %v1049 = vpop.permute.xlu0 %1048
      %1050 = vrot.lane.b32.xlu0 %v845, 127
      %v1051 = vpop.permute.xlu0 %1050
      %v1060 = vrot.slane %v1045, 4
      %v1061 = vsel %vm212, %v1060, %v1037
      %v1062 = vrot.slane %v1037, 4
      %v1063 = vsel %vm212, %v1045, %v1062
      %v1065 = vunpack.c.l.s4 1983009808
      %v1066 = vunpack.c.0.s8 %v1065
      %v1067 = vperm.slane %v1061, %v1066
      %v1069 = vunpack.c.l.s4 1983009808
      %v1070 = vunpack.c.0.s8 %v1069
      %v1071 = vperm.slane %v1063, %v1070
      %v1072 = vrot.slane %v1049, 4
      %v1073 = vsel %vm212, %v1072, %v1041
      %v1074 = vrot.slane %v1041, 4
      %v1075 = vsel %vm212, %v1049, %v1074
      %v1077 = vunpack.c.l.s4 1983009808
      %v1078 = vunpack.c.0.s8 %v1077
      %v1079 = vperm.slane %v1073, %v1078
      %v1081 = vunpack.c.l.s4 1983009808
      %v1082 = vunpack.c.0.s8 %v1081
      %v1083 = vperm.slane %v1075, %v1082
      %v1084 = vrot.slane %v1079, 4
      %v1085 = vsel %vm212, %v1084, %v1067
      %v1086 = vrot.slane %v1067, 4
      %v1087 = vsel %vm212, %v1079, %v1086
      %v1089 = vunpack.c.l.s4 1934713408
      %v1090 = vunpack.c.0.s8 %v1089
      %v1091 = vperm.slane %v1085, %v1090
      %v1093 = vunpack.c.l.s4 1934713408
      %v1094 = vunpack.c.0.s8 %v1093
      %v1095 = vperm.slane %v1087, %v1094
      %v1096 = vrot.slane %v1083, 4
      %v1097 = vsel %vm212, %v1096, %v1071
      %v1098 = vrot.slane %v1071, 4
      %v1099 = vsel %vm212, %v1083, %v1098
      %v1101 = vunpack.c.l.s4 1934713408
      %v1102 = vunpack.c.0.s8 %v1101
      %v1103 = vperm.slane %v1097, %v1102
      %v1105 = vunpack.c.l.s4 1934713408
      %v1106 = vunpack.c.0.s8 %v1105
      %v1107 = vperm.slane %v1099, %v1106
      %v1108 = vrot.slane %v1091, 4
      %v1109 = vsel %vm212, 0.0, %v1108
      %v1110 = vrot.slane %v1095, 4
      %v1111 = vsel %vm212, 0.0, %v1110
      %v1112 = vrot.slane %v1103, 4
      %v1113 = vsel %vm212, 0.0, %v1112
      %v1114 = vrot.slane %v1107, 4
      %v1115 = vsel %vm212, 0.0, %v1114
      %v1116 = vrot.slane %v1047, 4
      %v1117 = vsel %vm212, %v1116, %v1039
      %v1118 = vrot.slane %v1039, 4
      %v1119 = vsel %vm212, %v1047, %v1118
      %v1121 = vunpack.c.l.s4 1983009808
      %v1122 = vunpack.c.0.s8 %v1121
      %v1123 = vperm.slane %v1117, %v1122
      %v1125 = vunpack.c.l.s4 1983009808
      %v1126 = vunpack.c.0.s8 %v1125
      %v1127 = vperm.slane %v1119, %v1126
      %v1128 = vrot.slane %v1051, 4
      %v1129 = vsel %vm212, %v1128, %v1043
      %v1130 = vrot.slane %v1043, 4
      %v1131 = vsel %vm212, %v1051, %v1130
      %v1133 = vunpack.c.l.s4 1983009808
      %v1134 = vunpack.c.0.s8 %v1133
      %v1135 = vperm.slane %v1129, %v1134
      %v1137 = vunpack.c.l.s4 1983009808
      %v1138 = vunpack.c.0.s8 %v1137
      %v1139 = vperm.slane %v1131, %v1138
      %v1140 = vrot.slane %v1135, 4
      %v1141 = vsel %vm212, %v1140, %v1123
      %v1142 = vrot.slane %v1123, 4
      %v1143 = vsel %vm212, %v1135, %v1142
      %v1145 = vunpack.c.l.s4 1934713408
      %v1146 = vunpack.c.0.s8 %v1145
      %v1147 = vperm.slane %v1141, %v1146
      %v1149 = vunpack.c.l.s4 1934713408
      %v1150 = vunpack.c.0.s8 %v1149
      %v1151 = vperm.slane %v1143, %v1150
      %v1152 = vrot.slane %v1139, 4
      %v1153 = vsel %vm212, %v1152, %v1127
      %v1154 = vrot.slane %v1127, 4
      %v1155 = vsel %vm212, %v1139, %v1154
      %v1157 = vunpack.c.l.s4 1934713408
      %v1158 = vunpack.c.0.s8 %v1157
      %v1159 = vperm.slane %v1153, %v1158
      %v1161 = vunpack.c.l.s4 1934713408
      %v1162 = vunpack.c.0.s8 %v1161
      %v1163 = vperm.slane %v1155, %v1162
      %v1164 = vrot.slane %v1147, 4
      %v1165 = vsel %vm212, 0.0, %v1164
      %v1166 = vrot.slane %v1151, 4
      %v1167 = vsel %vm212, 0.0, %v1166
      %v1168 = vrot.slane %v1159, 4
      %v1169 = vsel %vm212, 0.0, %v1168
      %v1170 = vrot.slane %v1163, 4
      %v1171 = vsel %vm212, 0.0, %v1170
      %1173 = vrot.lane.b32.xlu0 %v1109, 16
      %v1174 = vpop.permute.xlu0 %1173
      %1177 = vrot.lane.b32.xlu0 %v1095, 32
      %v1178 = vpop.permute.xlu0 %1177
      %1181 = vrot.lane.b32.xlu0 %v1111, 48
      %v1182 = vpop.permute.xlu0 %1181
      %1185 = vrot.lane.b32.xlu0 %v1103, 64
      %v1186 = vpop.permute.xlu0 %1185
      %1189 = vrot.lane.b32.xlu0 %v1113, 80
      %v1190 = vpop.permute.xlu0 %1189
      %1193 = vrot.lane.b32.xlu0 %v1107, 96
      %v1194 = vpop.permute.xlu0 %1193
      %1197 = vrot.lane.b32.xlu0 %v1115, 112
      %v1198 = vpop.permute.xlu0 %1197
      %1201 = vrot.lane.b32.xlu0 %v1165, 16
      %v1202 = vpop.permute.xlu0 %1201
      %1205 = vrot.lane.b32.xlu0 %v1151, 32
      %v1206 = vpop.permute.xlu0 %1205
      %1209 = vrot.lane.b32.xlu0 %v1167, 48
      %v1210 = vpop.permute.xlu0 %1209
      %1213 = vrot.lane.b32.xlu0 %v1159, 64
      %v1214 = vpop.permute.xlu0 %1213
      %1217 = vrot.lane.b32.xlu0 %v1169, 80
      %v1218 = vpop.permute.xlu0 %1217
      %1221 = vrot.lane.b32.xlu0 %v1163, 96
      %v1222 = vpop.permute.xlu0 %1221
      %1225 = vrot.lane.b32.xlu0 %v1171, 112
      %v1226 = vpop.permute.xlu0 %1225
      %v1228 = vsel %vm380, %v1091, %v1174
      %v1229 = vsel %vm382, %v1228, %v1178
      %v1230 = vsel %vm384, %v1229, %v1182
      %v1231 = vsel %vm386, %v1230, %v1186
      %v1232 = vsel %vm388, %v1231, %v1190
      %v1233 = vsel %vm390, %v1232, %v1194
      %v1234 = vsel %vm392, %v1233, %v1198
      %v1235 = vsel %vm380, %v1147, %v1202
      %v1236 = vsel %vm382, %v1235, %v1206
      %v1237 = vsel %vm384, %v1236, %v1210
      %v1238 = vsel %vm386, %v1237, %v1214
      %v1239 = vsel %vm388, %v1238, %v1218
      %v1240 = vsel %vm390, %v1239, %v1222
      %v1241 = vsel %vm392, %v1240, %v1226
      %1242 = vrot.lane.b32.xlu0 %v828, 126
      %v1243 = vpop.permute.xlu0 %1242
      %1244 = vrot.lane.b32.xlu0 %v830, 126
      %v1245 = vpop.permute.xlu0 %1244
      %1246 = vrot.lane.b32.xlu0 %v833, 126
      %v1247 = vpop.permute.xlu0 %1246
      %1248 = vrot.lane.b32.xlu0 %v835, 126
      %v1249 = vpop.permute.xlu0 %1248
      %1250 = vrot.lane.b32.xlu0 %v838, 126
      %v1251 = vpop.permute.xlu0 %1250
      %1252 = vrot.lane.b32.xlu0 %v840, 126
      %v1253 = vpop.permute.xlu0 %1252
      %1254 = vrot.lane.b32.xlu0 %v843, 126
      %v1255 = vpop.permute.xlu0 %1254
      %1256 = vrot.lane.b32.xlu0 %v845, 126
      %v1257 = vpop.permute.xlu0 %1256
      %v1266 = vrot.slane %v1251, 4
      %v1267 = vsel %vm212, %v1266, %v1243
      %v1268 = vrot.slane %v1243, 4
      %v1269 = vsel %vm212, %v1251, %v1268
      %v1271 = vunpack.c.l.s4 1983009808
      %v1272 = vunpack.c.0.s8 %v1271
      %v1273 = vperm.slane %v1267, %v1272
      %v1275 = vunpack.c.l.s4 1983009808
      %v1276 = vunpack.c.0.s8 %v1275
      %v1277 = vperm.slane %v1269, %v1276
      %v1278 = vrot.slane %v1255, 4
      %v1279 = vsel %vm212, %v1278, %v1247
      %v1280 = vrot.slane %v1247, 4
      %v1281 = vsel %vm212, %v1255, %v1280
      %v1283 = vunpack.c.l.s4 1983009808
      %v1284 = vunpack.c.0.s8 %v1283
      %v1285 = vperm.slane %v1279, %v1284
      %v1287 = vunpack.c.l.s4 1983009808
      %v1288 = vunpack.c.0.s8 %v1287
      %v1289 = vperm.slane %v1281, %v1288
      %v1290 = vrot.slane %v1285, 4
      %v1291 = vsel %vm212, %v1290, %v1273
      %v1292 = vrot.slane %v1273, 4
      %v1293 = vsel %vm212, %v1285, %v1292
      %v1295 = vunpack.c.l.s4 1934713408
      %v1296 = vunpack.c.0.s8 %v1295
      %v1297 = vperm.slane %v1291, %v1296
      %v1299 = vunpack.c.l.s4 1934713408
      %v1300 = vunpack.c.0.s8 %v1299
      %v1301 = vperm.slane %v1293, %v1300
      %v1302 = vrot.slane %v1289, 4
      %v1303 = vsel %vm212, %v1302, %v1277
      %v1304 = vrot.slane %v1277, 4
      %v1305 = vsel %vm212, %v1289, %v1304
      %v1307 = vunpack.c.l.s4 1934713408
      %v1308 = vunpack.c.0.s8 %v1307
      %v1309 = vperm.slane %v1303, %v1308
      %v1311 = vunpack.c.l.s4 1934713408
      %v1312 = vunpack.c.0.s8 %v1311
      %v1313 = vperm.slane %v1305, %v1312
      %v1314 = vrot.slane %v1297, 4
      %v1315 = vsel %vm212, 0.0, %v1314
      %v1316 = vrot.slane %v1301, 4
      %v1317 = vsel %vm212, 0.0, %v1316
      %v1318 = vrot.slane %v1309, 4
      %v1319 = vsel %vm212, 0.0, %v1318
      %v1320 = vrot.slane %v1313, 4
      %v1321 = vsel %vm212, 0.0, %v1320
      %v1322 = vrot.slane %v1253, 4
      %v1323 = vsel %vm212, %v1322, %v1245
      %v1324 = vrot.slane %v1245, 4
      %v1325 = vsel %vm212, %v1253, %v1324
      %v1327 = vunpack.c.l.s4 1983009808
      %v1328 = vunpack.c.0.s8 %v1327
      %v1329 = vperm.slane %v1323, %v1328
      %v1331 = vunpack.c.l.s4 1983009808
      %v1332 = vunpack.c.0.s8 %v1331
      %v1333 = vperm.slane %v1325, %v1332
      %v1334 = vrot.slane %v1257, 4
      %v1335 = vsel %vm212, %v1334, %v1249
      %v1336 = vrot.slane %v1249, 4
      %v1337 = vsel %vm212, %v1257, %v1336
      %v1339 = vunpack.c.l.s4 1983009808
      %v1340 = vunpack.c.0.s8 %v1339
      %v1341 = vperm.slane %v1335, %v1340
      %v1343 = vunpack.c.l.s4 1983009808
      %v1344 = vunpack.c.0.s8 %v1343
      %v1345 = vperm.slane %v1337, %v1344
      %v1346 = vrot.slane %v1341, 4
      %v1347 = vsel %vm212, %v1346, %v1329
      %v1348 = vrot.slane %v1329, 4
      %v1349 = vsel %vm212, %v1341, %v1348
      %v1351 = vunpack.c.l.s4 1934713408
      %v1352 = vunpack.c.0.s8 %v1351
      %v1353 = vperm.slane %v1347, %v1352
      %v1355 = vunpack.c.l.s4 1934713408
      %v1356 = vunpack.c.0.s8 %v1355
      %v1357 = vperm.slane %v1349, %v1356
      %v1358 = vrot.slane %v1345, 4
      %v1359 = vsel %vm212, %v1358, %v1333
      %v1360 = vrot.slane %v1333, 4
      %v1361 = vsel %vm212, %v1345, %v1360
      %v1363 = vunpack.c.l.s4 1934713408
      %v1364 = vunpack.c.0.s8 %v1363
      %v1365 = vperm.slane %v1359, %v1364
      %v1367 = vunpack.c.l.s4 1934713408
      %v1368 = vunpack.c.0.s8 %v1367
      %v1369 = vperm.slane %v1361, %v1368
      %v1370 = vrot.slane %v1353, 4
      %v1371 = vsel %vm212, 0.0, %v1370
      %v1372 = vrot.slane %v1357, 4
      %v1373 = vsel %vm212, 0.0, %v1372
      %v1374 = vrot.slane %v1365, 4
      %v1375 = vsel %vm212, 0.0, %v1374
      %v1376 = vrot.slane %v1369, 4
      %v1377 = vsel %vm212, 0.0, %v1376
      %1379 = vrot.lane.b32.xlu0 %v1315, 16
      %v1380 = vpop.permute.xlu0 %1379
      %1383 = vrot.lane.b32.xlu0 %v1301, 32
      %v1384 = vpop.permute.xlu0 %1383
      %1387 = vrot.lane.b32.xlu0 %v1317, 48
      %v1388 = vpop.permute.xlu0 %1387
      %1391 = vrot.lane.b32.xlu0 %v1309, 64
      %v1392 = vpop.permute.xlu0 %1391
      %1395 = vrot.lane.b32.xlu0 %v1319, 80
      %v1396 = vpop.permute.xlu0 %1395
      %1399 = vrot.lane.b32.xlu0 %v1313, 96
      %v1400 = vpop.permute.xlu0 %1399
      %1403 = vrot.lane.b32.xlu0 %v1321, 112
      %v1404 = vpop.permute.xlu0 %1403
      %1407 = vrot.lane.b32.xlu0 %v1371, 16
      %v1408 = vpop.permute.xlu0 %1407
      %1411 = vrot.lane.b32.xlu0 %v1357, 32
      %v1412 = vpop.permute.xlu0 %1411
      %1415 = vrot.lane.b32.xlu0 %v1373, 48
      %v1416 = vpop.permute.xlu0 %1415
      %1419 = vrot.lane.b32.xlu0 %v1365, 64
      %v1420 = vpop.permute.xlu0 %1419
      %1423 = vrot.lane.b32.xlu0 %v1375, 80
      %v1424 = vpop.permute.xlu0 %1423
      %1427 = vrot.lane.b32.xlu0 %v1369, 96
      %v1428 = vpop.permute.xlu0 %1427
      %1431 = vrot.lane.b32.xlu0 %v1377, 112
      %v1432 = vpop.permute.xlu0 %1431
      %v1434 = vsel %vm380, %v1297, %v1380
      %v1435 = vsel %vm382, %v1434, %v1384
      %v1436 = vsel %vm384, %v1435, %v1388
      %v1437 = vsel %vm386, %v1436, %v1392
      %v1438 = vsel %vm388, %v1437, %v1396
      %v1439 = vsel %vm390, %v1438, %v1400
      %v1440 = vsel %vm392, %v1439, %v1404
      %v1441 = vsel %vm380, %v1353, %v1408
      %v1442 = vsel %vm382, %v1441, %v1412
      %v1443 = vsel %vm384, %v1442, %v1416
      %v1444 = vsel %vm386, %v1443, %v1420
      %v1445 = vsel %vm388, %v1444, %v1424
      %v1446 = vsel %vm390, %v1445, %v1428
      %v1447 = vsel %vm392, %v1446, %v1432
      %vm1448 = vcmask 1045504
      %v1449 = vrot.slane %v199, 2
      %v1450 = vrot.slane %v200, 2
      %v1451 = vsel %vm1448, %v1449, %v1450
      %v1452 = vrot.slane %v201, 2
      %v1453 = vsel %vm1448, %v1450, %v1452
      %v1454 = vrot.slane %v202, 2
      %v1455 = vrot.slane %v203, 2
      %v1456 = vsel %vm1448, %v1454, %v1455
      %v1457 = vrot.slane %v204, 2
      %v1458 = vsel %vm1448, %v1455, %v1457
      %v1459 = vrot.slane %v205, 2
      %v1460 = vrot.slane %v206, 2
      %v1461 = vsel %vm1448, %v1459, %v1460
      %v1462 = vrot.slane %v207, 2
      %v1463 = vsel %vm1448, %v1460, %v1462
      %v1464 = vrot.slane %v208, 2
      %v1465 = vrot.slane %v209, 2
      %v1466 = vsel %vm1448, %v1464, %v1465
      %v1467 = vrot.slane %v210, 2
      %v1468 = vsel %vm1448, %v1465, %v1467
      %v1477 = vrot.slane %v1461, 4
      %v1478 = vsel %vm212, %v1477, %v1451
      %v1479 = vrot.slane %v1451, 4
      %v1480 = vsel %vm212, %v1461, %v1479
      %v1482 = vunpack.c.l.s4 1983009808
      %v1483 = vunpack.c.0.s8 %v1482
      %v1484 = vperm.slane %v1478, %v1483
      %v1486 = vunpack.c.l.s4 1983009808
      %v1487 = vunpack.c.0.s8 %v1486
      %v1488 = vperm.slane %v1480, %v1487
      %v1489 = vrot.slane %v1466, 4
      %v1490 = vsel %vm212, %v1489, %v1456
      %v1491 = vrot.slane %v1456, 4
      %v1492 = vsel %vm212, %v1466, %v1491
      %v1494 = vunpack.c.l.s4 1983009808
      %v1495 = vunpack.c.0.s8 %v1494
      %v1496 = vperm.slane %v1490, %v1495
      %v1498 = vunpack.c.l.s4 1983009808
      %v1499 = vunpack.c.0.s8 %v1498
      %v1500 = vperm.slane %v1492, %v1499
      %v1501 = vrot.slane %v1496, 4
      %v1502 = vsel %vm212, %v1501, %v1484
      %v1503 = vrot.slane %v1484, 4
      %v1504 = vsel %vm212, %v1496, %v1503
      %v1506 = vunpack.c.l.s4 1934713408
      %v1507 = vunpack.c.0.s8 %v1506
      %v1508 = vperm.slane %v1502, %v1507
      %v1510 = vunpack.c.l.s4 1934713408
      %v1511 = vunpack.c.0.s8 %v1510
      %v1512 = vperm.slane %v1504, %v1511
      %v1513 = vrot.slane %v1500, 4
      %v1514 = vsel %vm212, %v1513, %v1488
      %v1515 = vrot.slane %v1488, 4
      %v1516 = vsel %vm212, %v1500, %v1515
      %v1518 = vunpack.c.l.s4 1934713408
      %v1519 = vunpack.c.0.s8 %v1518
      %v1520 = vperm.slane %v1514, %v1519
      %v1522 = vunpack.c.l.s4 1934713408
      %v1523 = vunpack.c.0.s8 %v1522
      %v1524 = vperm.slane %v1516, %v1523
      %v1525 = vrot.slane %v1508, 4
      %v1526 = vsel %vm212, 0.0, %v1525
      %v1527 = vrot.slane %v1512, 4
      %v1528 = vsel %vm212, 0.0, %v1527
      %v1529 = vrot.slane %v1520, 4
      %v1530 = vsel %vm212, 0.0, %v1529
      %v1531 = vrot.slane %v1524, 4
      %v1532 = vsel %vm212, 0.0, %v1531
      %v1533 = vrot.slane %v1463, 4
      %v1534 = vsel %vm212, %v1533, %v1453
      %v1535 = vrot.slane %v1453, 4
      %v1536 = vsel %vm212, %v1463, %v1535
      %v1538 = vunpack.c.l.s4 1983009808
      %v1539 = vunpack.c.0.s8 %v1538
      %v1540 = vperm.slane %v1534, %v1539
      %v1542 = vunpack.c.l.s4 1983009808
      %v1543 = vunpack.c.0.s8 %v1542
      %v1544 = vperm.slane %v1536, %v1543
      %v1545 = vrot.slane %v1468, 4
      %v1546 = vsel %vm212, %v1545, %v1458
      %v1547 = vrot.slane %v1458, 4
      %v1548 = vsel %vm212, %v1468, %v1547
      %v1550 = vunpack.c.l.s4 1983009808
      %v1551 = vunpack.c.0.s8 %v1550
      %v1552 = vperm.slane %v1546, %v1551
      %v1554 = vunpack.c.l.s4 1983009808
      %v1555 = vunpack.c.0.s8 %v1554
      %v1556 = vperm.slane %v1548, %v1555
      %v1557 = vrot.slane %v1552, 4
      %v1558 = vsel %vm212, %v1557, %v1540
      %v1559 = vrot.slane %v1540, 4
      %v1560 = vsel %vm212, %v1552, %v1559
      %v1562 = vunpack.c.l.s4 1934713408
      %v1563 = vunpack.c.0.s8 %v1562
      %v1564 = vperm.slane %v1558, %v1563
      %v1566 = vunpack.c.l.s4 1934713408
      %v1567 = vunpack.c.0.s8 %v1566
      %v1568 = vperm.slane %v1560, %v1567
      %v1569 = vrot.slane %v1556, 4
      %v1570 = vsel %vm212, %v1569, %v1544
      %v1571 = vrot.slane %v1544, 4
      %v1572 = vsel %vm212, %v1556, %v1571
      %v1574 = vunpack.c.l.s4 1934713408
      %v1575 = vunpack.c.0.s8 %v1574
      %v1576 = vperm.slane %v1570, %v1575
      %v1578 = vunpack.c.l.s4 1934713408
      %v1579 = vunpack.c.0.s8 %v1578
      %v1580 = vperm.slane %v1572, %v1579
      %v1581 = vrot.slane %v1564, 4
      %v1582 = vsel %vm212, 0.0, %v1581
      %v1583 = vrot.slane %v1568, 4
      %v1584 = vsel %vm212, 0.0, %v1583
      %v1585 = vrot.slane %v1576, 4
      %v1586 = vsel %vm212, 0.0, %v1585
      %v1587 = vrot.slane %v1580, 4
      %v1588 = vsel %vm212, 0.0, %v1587
      %1590 = vrot.lane.b32.xlu0 %v1526, 16
      %v1591 = vpop.permute.xlu0 %1590
      %1594 = vrot.lane.b32.xlu0 %v1512, 32
      %v1595 = vpop.permute.xlu0 %1594
      %1598 = vrot.lane.b32.xlu0 %v1528, 48
      %v1599 = vpop.permute.xlu0 %1598
      %1602 = vrot.lane.b32.xlu0 %v1520, 64
      %v1603 = vpop.permute.xlu0 %1602
      %1606 = vrot.lane.b32.xlu0 %v1530, 80
      %v1607 = vpop.permute.xlu0 %1606
      %1610 = vrot.lane.b32.xlu0 %v1524, 96
      %v1611 = vpop.permute.xlu0 %1610
      %1614 = vrot.lane.b32.xlu0 %v1532, 112
      %v1615 = vpop.permute.xlu0 %1614
      %1618 = vrot.lane.b32.xlu0 %v1582, 16
      %v1619 = vpop.permute.xlu0 %1618
      %1622 = vrot.lane.b32.xlu0 %v1568, 32
      %v1623 = vpop.permute.xlu0 %1622
      %1626 = vrot.lane.b32.xlu0 %v1584, 48
      %v1627 = vpop.permute.xlu0 %1626
      %1630 = vrot.lane.b32.xlu0 %v1576, 64
      %v1631 = vpop.permute.xlu0 %1630
      %1634 = vrot.lane.b32.xlu0 %v1586, 80
      %v1635 = vpop.permute.xlu0 %1634
      %1638 = vrot.lane.b32.xlu0 %v1580, 96
      %v1639 = vpop.permute.xlu0 %1638
      %1642 = vrot.lane.b32.xlu0 %v1588, 112
      %v1643 = vpop.permute.xlu0 %1642
      %v1645 = vsel %vm380, %v1508, %v1591
      %v1646 = vsel %vm382, %v1645, %v1595
      %v1647 = vsel %vm384, %v1646, %v1599
      %v1648 = vsel %vm386, %v1647, %v1603
      %v1649 = vsel %vm388, %v1648, %v1607
      %v1650 = vsel %vm390, %v1649, %v1611
      %v1651 = vsel %vm392, %v1650, %v1615
      %v1652 = vsel %vm380, %v1564, %v1619
      %v1653 = vsel %vm382, %v1652, %v1623
      %v1654 = vsel %vm384, %v1653, %v1627
      %v1655 = vsel %vm386, %v1654, %v1631
      %v1656 = vsel %vm388, %v1655, %v1635
      %v1657 = vsel %vm390, %v1656, %v1639
      %v1658 = vsel %vm392, %v1657, %v1643
      %1659 = vrot.lane.b32.xlu0 %v1451, 127
      %v1660 = vpop.permute.xlu0 %1659
      %1661 = vrot.lane.b32.xlu0 %v1453, 127
      %v1662 = vpop.permute.xlu0 %1661
      %1663 = vrot.lane.b32.xlu0 %v1456, 127
      %v1664 = vpop.permute.xlu0 %1663
      %1665 = vrot.lane.b32.xlu0 %v1458, 127
      %v1666 = vpop.permute.xlu0 %1665
      %1667 = vrot.lane.b32.xlu0 %v1461, 127
      %v1668 = vpop.permute.xlu0 %1667
      %1669 = vrot.lane.b32.xlu0 %v1463, 127
      %v1670 = vpop.permute.xlu0 %1669
      %1671 = vrot.lane.b32.xlu0 %v1466, 127
      %v1672 = vpop.permute.xlu0 %1671
      %1673 = vrot.lane.b32.xlu0 %v1468, 127
      %v1674 = vpop.permute.xlu0 %1673
      %v1683 = vrot.slane %v1668, 4
      %v1684 = vsel %vm212, %v1683, %v1660
      %v1685 = vrot.slane %v1660, 4
      %v1686 = vsel %vm212, %v1668, %v1685
      %v1688 = vunpack.c.l.s4 1983009808
      %v1689 = vunpack.c.0.s8 %v1688
      %v1690 = vperm.slane %v1684, %v1689
      %v1692 = vunpack.c.l.s4 1983009808
      %v1693 = vunpack.c.0.s8 %v1692
      %v1694 = vperm.slane %v1686, %v1693
      %v1695 = vrot.slane %v1672, 4
      %v1696 = vsel %vm212, %v1695, %v1664
      %v1697 = vrot.slane %v1664, 4
      %v1698 = vsel %vm212, %v1672, %v1697
      %v1700 = vunpack.c.l.s4 1983009808
      %v1701 = vunpack.c.0.s8 %v1700
      %v1702 = vperm.slane %v1696, %v1701
      %v1704 = vunpack.c.l.s4 1983009808
      %v1705 = vunpack.c.0.s8 %v1704
      %v1706 = vperm.slane %v1698, %v1705
      %v1707 = vrot.slane %v1702, 4
      %v1708 = vsel %vm212, %v1707, %v1690
      %v1709 = vrot.slane %v1690, 4
      %v1710 = vsel %vm212, %v1702, %v1709
      %v1712 = vunpack.c.l.s4 1934713408
      %v1713 = vunpack.c.0.s8 %v1712
      %v1714 = vperm.slane %v1708, %v1713
      %v1716 = vunpack.c.l.s4 1934713408
      %v1717 = vunpack.c.0.s8 %v1716
      %v1718 = vperm.slane %v1710, %v1717
      %v1719 = vrot.slane %v1706, 4
      %v1720 = vsel %vm212, %v1719, %v1694
      %v1721 = vrot.slane %v1694, 4
      %v1722 = vsel %vm212, %v1706, %v1721
      %v1724 = vunpack.c.l.s4 1934713408
      %v1725 = vunpack.c.0.s8 %v1724
      %v1726 = vperm.slane %v1720, %v1725
      %v1728 = vunpack.c.l.s4 1934713408
      %v1729 = vunpack.c.0.s8 %v1728
      %v1730 = vperm.slane %v1722, %v1729
      %v1731 = vrot.slane %v1714, 4
      %v1732 = vsel %vm212, 0.0, %v1731
      %v1733 = vrot.slane %v1718, 4
      %v1734 = vsel %vm212, 0.0, %v1733
      %v1735 = vrot.slane %v1726, 4
      %v1736 = vsel %vm212, 0.0, %v1735
      %v1737 = vrot.slane %v1730, 4
      %v1738 = vsel %vm212, 0.0, %v1737
      %v1739 = vrot.slane %v1670, 4
      %v1740 = vsel %vm212, %v1739, %v1662
      %v1741 = vrot.slane %v1662, 4
      %v1742 = vsel %vm212, %v1670, %v1741
      %v1744 = vunpack.c.l.s4 1983009808
      %v1745 = vunpack.c.0.s8 %v1744
      %v1746 = vperm.slane %v1740, %v1745
      %v1748 = vunpack.c.l.s4 1983009808
      %v1749 = vunpack.c.0.s8 %v1748
      %v1750 = vperm.slane %v1742, %v1749
      %v1751 = vrot.slane %v1674, 4
      %v1752 = vsel %vm212, %v1751, %v1666
      %v1753 = vrot.slane %v1666, 4
      %v1754 = vsel %vm212, %v1674, %v1753
      %v1756 = vunpack.c.l.s4 1983009808
      %v1757 = vunpack.c.0.s8 %v1756
      %v1758 = vperm.slane %v1752, %v1757
      %v1760 = vunpack.c.l.s4 1983009808
      %v1761 = vunpack.c.0.s8 %v1760
      %v1762 = vperm.slane %v1754, %v1761
      %v1763 = vrot.slane %v1758, 4
      %v1764 = vsel %vm212, %v1763, %v1746
      %v1765 = vrot.slane %v1746, 4
      %v1766 = vsel %vm212, %v1758, %v1765
      %v1768 = vunpack.c.l.s4 1934713408
      %v1769 = vunpack.c.0.s8 %v1768
      %v1770 = vperm.slane %v1764, %v1769
      %v1772 = vunpack.c.l.s4 1934713408
      %v1773 = vunpack.c.0.s8 %v1772
      %v1774 = vperm.slane %v1766, %v1773
      %v1775 = vrot.slane %v1762, 4
      %v1776 = vsel %vm212, %v1775, %v1750
      %v1777 = vrot.slane %v1750, 4
      %v1778 = vsel %vm212, %v1762, %v1777
      %v1780 = vunpack.c.l.s4 1934713408
      %v1781 = vunpack.c.0.s8 %v1780
      %v1782 = vperm.slane %v1776, %v1781
      %v1784 = vunpack.c.l.s4 1934713408
      %v1785 = vunpack.c.0.s8 %v1784
      %v1786 = vperm.slane %v1778, %v1785
      %v1787 = vrot.slane %v1770, 4
      %v1788 = vsel %vm212, 0.0, %v1787
      %v1789 = vrot.slane %v1774, 4
      %v1790 = vsel %vm212, 0.0, %v1789
      %v1791 = vrot.slane %v1782, 4
      %v1792 = vsel %vm212, 0.0, %v1791
      %v1793 = vrot.slane %v1786, 4
      %v1794 = vsel %vm212, 0.0, %v1793
      %1796 = vrot.lane.b32.xlu0 %v1732, 16
      %v1797 = vpop.permute.xlu0 %1796
      %1800 = vrot.lane.b32.xlu0 %v1718, 32
      %v1801 = vpop.permute.xlu0 %1800
      %1804 = vrot.lane.b32.xlu0 %v1734, 48
      %v1805 = vpop.permute.xlu0 %1804
      %1808 = vrot.lane.b32.xlu0 %v1726, 64
      %v1809 = vpop.permute.xlu0 %1808
      %1812 = vrot.lane.b32.xlu0 %v1736, 80
      %v1813 = vpop.permute.xlu0 %1812
      %1816 = vrot.lane.b32.xlu0 %v1730, 96
      %v1817 = vpop.permute.xlu0 %1816
      %1820 = vrot.lane.b32.xlu0 %v1738, 112
      %v1821 = vpop.permute.xlu0 %1820
      %1824 = vrot.lane.b32.xlu0 %v1788, 16
      %v1825 = vpop.permute.xlu0 %1824
      %1828 = vrot.lane.b32.xlu0 %v1774, 32
      %v1829 = vpop.permute.xlu0 %1828
      %1832 = vrot.lane.b32.xlu0 %v1790, 48
      %v1833 = vpop.permute.xlu0 %1832
      %1836 = vrot.lane.b32.xlu0 %v1782, 64
      %v1837 = vpop.permute.xlu0 %1836
      %1840 = vrot.lane.b32.xlu0 %v1792, 80
      %v1841 = vpop.permute.xlu0 %1840
      %1844 = vrot.lane.b32.xlu0 %v1786, 96
      %v1845 = vpop.permute.xlu0 %1844
      %1848 = vrot.lane.b32.xlu0 %v1794, 112
      %v1849 = vpop.permute.xlu0 %1848
      %v1851 = vsel %vm380, %v1714, %v1797
      %v1852 = vsel %vm382, %v1851, %v1801
      %v1853 = vsel %vm384, %v1852, %v1805
      %v1854 = vsel %vm386, %v1853, %v1809
      %v1855 = vsel %vm388, %v1854, %v1813
      %v1856 = vsel %vm390, %v1855, %v1817
      %v1857 = vsel %vm392, %v1856, %v1821
      %v1858 = vsel %vm380, %v1770, %v1825
      %v1859 = vsel %vm382, %v1858, %v1829
      %v1860 = vsel %vm384, %v1859, %v1833
      %v1861 = vsel %vm386, %v1860, %v1837
      %v1862 = vsel %vm388, %v1861, %v1841
      %v1863 = vsel %vm390, %v1862, %v1845
      %v1864 = vsel %vm392, %v1863, %v1849
      %1865 = vrot.lane.b32.xlu0 %v1451, 126
      %v1866 = vpop.permute.xlu0 %1865
      %1867 = vrot.lane.b32.xlu0 %v1453, 126
      %v1868 = vpop.permute.xlu0 %1867
      %1869 = vrot.lane.b32.xlu0 %v1456, 126
      %v1870 = vpop.permute.xlu0 %1869
      %1871 = vrot.lane.b32.xlu0 %v1458, 126
      %v1872 = vpop.permute.xlu0 %1871
      %1873 = vrot.lane.b32.xlu0 %v1461, 126
      %v1874 = vpop.permute.xlu0 %1873
      %1875 = vrot.lane.b32.xlu0 %v1463, 126
      %v1876 = vpop.permute.xlu0 %1875
      %1877 = vrot.lane.b32.xlu0 %v1466, 126
      %v1878 = vpop.permute.xlu0 %1877
      %1879 = vrot.lane.b32.xlu0 %v1468, 126
      %v1880 = vpop.permute.xlu0 %1879
      %v1889 = vrot.slane %v1874, 4
      %v1890 = vsel %vm212, %v1889, %v1866
      %v1891 = vrot.slane %v1866, 4
      %v1892 = vsel %vm212, %v1874, %v1891
      %v1894 = vunpack.c.l.s4 1983009808
      %v1895 = vunpack.c.0.s8 %v1894
      %v1896 = vperm.slane %v1890, %v1895
      %v1898 = vunpack.c.l.s4 1983009808
      %v1899 = vunpack.c.0.s8 %v1898
      %v1900 = vperm.slane %v1892, %v1899
      %v1901 = vrot.slane %v1878, 4
      %v1902 = vsel %vm212, %v1901, %v1870
      %v1903 = vrot.slane %v1870, 4
      %v1904 = vsel %vm212, %v1878, %v1903
      %v1906 = vunpack.c.l.s4 1983009808
      %v1907 = vunpack.c.0.s8 %v1906
      %v1908 = vperm.slane %v1902, %v1907
      %v1910 = vunpack.c.l.s4 1983009808
      %v1911 = vunpack.c.0.s8 %v1910
      %v1912 = vperm.slane %v1904, %v1911
      %v1913 = vrot.slane %v1908, 4
      %v1914 = vsel %vm212, %v1913, %v1896
      %v1915 = vrot.slane %v1896, 4
      %v1916 = vsel %vm212, %v1908, %v1915
      %v1918 = vunpack.c.l.s4 1934713408
      %v1919 = vunpack.c.0.s8 %v1918
      %v1920 = vperm.slane %v1914, %v1919
      %v1922 = vunpack.c.l.s4 1934713408
      %v1923 = vunpack.c.0.s8 %v1922
      %v1924 = vperm.slane %v1916, %v1923
      %v1925 = vrot.slane %v1912, 4
      %v1926 = vsel %vm212, %v1925, %v1900
      %v1927 = vrot.slane %v1900, 4
      %v1928 = vsel %vm212, %v1912, %v1927
      %v1930 = vunpack.c.l.s4 1934713408
      %v1931 = vunpack.c.0.s8 %v1930
      %v1932 = vperm.slane %v1926, %v1931
      %v1934 = vunpack.c.l.s4 1934713408
      %v1935 = vunpack.c.0.s8 %v1934
      %v1936 = vperm.slane %v1928, %v1935
      %v1937 = vrot.slane %v1920, 4
      %v1938 = vsel %vm212, 0.0, %v1937
      %v1939 = vrot.slane %v1924, 4
      %v1940 = vsel %vm212, 0.0, %v1939
      %v1941 = vrot.slane %v1932, 4
      %v1942 = vsel %vm212, 0.0, %v1941
      %v1943 = vrot.slane %v1936, 4
      %v1944 = vsel %vm212, 0.0, %v1943
      %v1945 = vrot.slane %v1876, 4
      %v1946 = vsel %vm212, %v1945, %v1868
      %v1947 = vrot.slane %v1868, 4
      %v1948 = vsel %vm212, %v1876, %v1947
      %v1950 = vunpack.c.l.s4 1983009808
      %v1951 = vunpack.c.0.s8 %v1950
      %v1952 = vperm.slane %v1946, %v1951
      %v1954 = vunpack.c.l.s4 1983009808
      %v1955 = vunpack.c.0.s8 %v1954
      %v1956 = vperm.slane %v1948, %v1955
      %v1957 = vrot.slane %v1880, 4
      %v1958 = vsel %vm212, %v1957, %v1872
      %v1959 = vrot.slane %v1872, 4
      %v1960 = vsel %vm212, %v1880, %v1959
      %v1962 = vunpack.c.l.s4 1983009808
      %v1963 = vunpack.c.0.s8 %v1962
      %v1964 = vperm.slane %v1958, %v1963
      %v1966 = vunpack.c.l.s4 1983009808
      %v1967 = vunpack.c.0.s8 %v1966
      %v1968 = vperm.slane %v1960, %v1967
      %v1969 = vrot.slane %v1964, 4
      %v1970 = vsel %vm212, %v1969, %v1952
      %v1971 = vrot.slane %v1952, 4
      %v1972 = vsel %vm212, %v1964, %v1971
      %v1974 = vunpack.c.l.s4 1934713408
      %v1975 = vunpack.c.0.s8 %v1974
      %v1976 = vperm.slane %v1970, %v1975
      %v1978 = vunpack.c.l.s4 1934713408
      %v1979 = vunpack.c.0.s8 %v1978
      %v1980 = vperm.slane %v1972, %v1979
      %v1981 = vrot.slane %v1968, 4
      %v1982 = vsel %vm212, %v1981, %v1956
      %v1983 = vrot.slane %v1956, 4
      %v1984 = vsel %vm212, %v1968, %v1983
      %v1986 = vunpack.c.l.s4 1934713408
      %v1987 = vunpack.c.0.s8 %v1986
      %v1988 = vperm.slane %v1982, %v1987
      %v1990 = vunpack.c.l.s4 1934713408
      %v1991 = vunpack.c.0.s8 %v1990
      %v1992 = vperm.slane %v1984, %v1991
      %v1993 = vrot.slane %v1976, 4
      %v1994 = vsel %vm212, 0.0, %v1993
      %v1995 = vrot.slane %v1980, 4
      %v1996 = vsel %vm212, 0.0, %v1995
      %v1997 = vrot.slane %v1988, 4
      %v1998 = vsel %vm212, 0.0, %v1997
      %v1999 = vrot.slane %v1992, 4
      %v2000 = vsel %vm212, 0.0, %v1999
      %2002 = vrot.lane.b32.xlu0 %v1938, 16
      %v2003 = vpop.permute.xlu0 %2002
      %2006 = vrot.lane.b32.xlu0 %v1924, 32
      %v2007 = vpop.permute.xlu0 %2006
      %2010 = vrot.lane.b32.xlu0 %v1940, 48
      %v2011 = vpop.permute.xlu0 %2010
      %2014 = vrot.lane.b32.xlu0 %v1932, 64
      %v2015 = vpop.permute.xlu0 %2014
      %2018 = vrot.lane.b32.xlu0 %v1942, 80
      %v2019 = vpop.permute.xlu0 %2018
      %2022 = vrot.lane.b32.xlu0 %v1936, 96
      %v2023 = vpop.permute.xlu0 %2022
      %2026 = vrot.lane.b32.xlu0 %v1944, 112
      %v2027 = vpop.permute.xlu0 %2026
      %2030 = vrot.lane.b32.xlu0 %v1994, 16
      %v2031 = vpop.permute.xlu0 %2030
      %2034 = vrot.lane.b32.xlu0 %v1980, 32
      %v2035 = vpop.permute.xlu0 %2034
      %2038 = vrot.lane.b32.xlu0 %v1996, 48
      %v2039 = vpop.permute.xlu0 %2038
      %2042 = vrot.lane.b32.xlu0 %v1988, 64
      %v2043 = vpop.permute.xlu0 %2042
      %2046 = vrot.lane.b32.xlu0 %v1998, 80
      %v2047 = vpop.permute.xlu0 %2046
      %2050 = vrot.lane.b32.xlu0 %v1992, 96
      %v2051 = vpop.permute.xlu0 %2050
      %2054 = vrot.lane.b32.xlu0 %v2000, 112
      %v2055 = vpop.permute.xlu0 %2054
      %v2057 = vsel %vm380, %v1920, %v2003
      %v2058 = vsel %vm382, %v2057, %v2007
      %v2059 = vsel %vm384, %v2058, %v2011
      %v2060 = vsel %vm386, %v2059, %v2015
      %v2061 = vsel %vm388, %v2060, %v2019
      %v2062 = vsel %vm390, %v2061, %v2023
      %v2063 = vsel %vm392, %v2062, %v2027
      %v2064 = vsel %vm380, %v1976, %v2031
      %v2065 = vsel %vm382, %v2064, %v2035
      %v2066 = vsel %vm384, %v2065, %v2039
      %v2067 = vsel %vm386, %v2066, %v2043
      %v2068 = vsel %vm388, %v2067, %v2047
      %v2069 = vsel %vm390, %v2068, %v2051
      %v2070 = vsel %vm392, %v2069, %v2055
      %v2073 = vrot.slane %v607, 4
      %v2074 = vrot.slane %v614, 4
      %v2079 = vrot.slane %v1028, 4
      %v2080 = vrot.slane %v1035, 4
      %v2085 = vrot.slane %v1440, 4
      %v2086 = vrot.slane %v1447, 4
      %v2091 = vrot.slane %v1857, 4
      %v2092 = vrot.slane %v1864, 4
      %vm2095 = vcmask 1043456
      %v2096 = vsel %vm2095, %v393, %v2073
      %v2097 = vsel %vm2095, %v400, %v2074
      %v2098 = vsel %vm2095, %v813, %v2079
      %v2099 = vsel %vm2095, %v820, %v2080
      %v2100 = vsel %vm2095, %v1234, %v2085
      %v2101 = vsel %vm2095, %v1241, %v2086
      %v2102 = vsel %vm2095, %v1651, %v2091
      %v2103 = vsel %vm2095, %v1658, %v2092
      %v2104 = vsel %vm2095, %v2063, 0.0
      %v2105 = vsel %vm2095, %v2070, 0.0
      %v2106 = vld [vmem:[%s1] sm:$0xff]
      %vm2107 = vcmask 326656
      %v2109 = vsel %vm2107, %v2106, 0
      %2111 = vmatpush.msra.mxu0 0.0
      %2112 = vmatpush.msra.mxu0 0.0
      %2113 = vmatpush.msra.mxu0 0.0
      %2114 = vmatpush.msra.mxu0 0.0
      %2115 = vmatpush.msra.mxu0 0.0
      %2116 = vmatpush.msra.mxu0 0.0
      %2117 = vmatpush.msra.mxu0 0.0
      %2118 = vmatpush.msra.mxu0 0.0
      %2119 = vmatpush.msra.mxu0 0.0
      %2120 = vmatpush.msra.mxu0 0.0
      %2121 = vmatpush.msra.mxu0 0.0
      %2122 = vmatpush.msra.mxu0 %v2104
      %2123 = vmatpush.msra.mxu0 %v2102
      %2124 = vmatpush.msra.mxu0 %v2100
      %2125 = vmatpush.msra.mxu0 %v2098
      %2126 = vmatpush.msra.mxu0 %v2096
      %2127 = vmatmul.f32.gmra.mxu0 %v2109
      %v2128 = vpop.f32.mrf.mxu0
      %v2129 = vadd.f32 0.0, %v2128
      %2130 = vdwg.mxu0
      %2131 = vmatpush.msra.mxu0 0.0
      %2132 = vmatpush.msra.mxu0 0.0
      %2133 = vmatpush.msra.mxu0 0.0
      %2134 = vmatpush.msra.mxu0 0.0
      %2135 = vmatpush.msra.mxu0 0.0
      %2136 = vmatpush.msra.mxu0 0.0
      %2137 = vmatpush.msra.mxu0 0.0
      %2138 = vmatpush.msra.mxu0 0.0
      %2139 = vmatpush.msra.mxu0 0.0
      %2140 = vmatpush.msra.mxu0 0.0
      %2141 = vmatpush.msra.mxu0 0.0
      %2142 = vmatpush.msra.mxu0 %v2105
      %2143 = vmatpush.msra.mxu0 %v2103
      %2144 = vmatpush.msra.mxu0 %v2101
      %2145 = vmatpush.msra.mxu0 %v2099
      %2146 = vmatpush.msra.mxu0 %v2097
      %2147 = vmatmul.f32.gmra.mxu0 %v2109
      %v2148 = vpop.f32.mrf.mxu0
      %v2149 = vadd.f32 0.0, %v2148
      %2150 = vdwg.mxu0
      %v2151 = vadd.f32 %v2129, %v2149
      %2152 = vadd.xlane.f32.xlu0 %v2151
      %v2153 = vpop.xlane.xlu0 %2152
      %v2154 = vmul.f32 %v2129, %v2129
      %v2155 = vmul.f32 %v2149, %v2149
      %v2156 = vadd.f32 %v2154, %v2155
      %2157 = vadd.xlane.f32.xlu0 %v2156
      %v2158 = vpop.xlane.xlu0 %2157
      %p2159 = scmp.eq.s32.totalorder %s20, 0
      // Predicated region
      $region29: #{tpu_custom_call.1} parent=27 // pred_check
        %p2160 = pneg %p2159
      $region30: #{tpu_custom_call.1} parent=27 // pred_check_branch
        %2162 = sbr.rel (%p2160) target = $region32
      $region31: #{tpu_custom_call.1} parent=27 // pred_region
        %vm2163 = vcmask 7168
        %2164 = vst.msk [vmem:[%s194] sm:$0xff] %vm2163, %v2153
        %2165 = vst.msk [vmem:[%s198] sm:$0xff] %vm2163, %v2158
      $region32: #{tpu_custom_call.1} parent=27 // pred_fallthru
        _
      %p2166 = scmp.gt.s32.totalorder %s20, 0
      // Predicated region
      $region33: #{tpu_custom_call.1} parent=27 // pred_check
        %p2167 = pneg %p2166
      $region34: #{tpu_custom_call.1} parent=27 // pred_check_branch
        %2169 = sbr.rel (%p2167) target = $region36
      $region35: #{tpu_custom_call.1} parent=27 // pred_region
        %v2170 = vld [vmem:[%s194] sm:$0xff]
        %v2171 = vadd.f32 %v2170, %v2153
        %vm2172 = vcmask 7168
        %2173 = vst.msk [vmem:[%s194] sm:$0xff] %vm2172, %v2171
        %v2174 = vld [vmem:[%s198] sm:$0xff]
        %v2175 = vadd.f32 %v2174, %v2158
        %2176 = vst.msk [vmem:[%s198] sm:$0xff] %vm2172, %v2175
      $region36: #{tpu_custom_call.1} parent=27 // pred_fallthru
        _
      %p2177 = scmp.lt.s32.totalorder %s19, 1
      %s2178 = scalar_select %p2177, %s19, 1
      %s2179 = smul.addr %s2178, 8
      %s2180 = scalar_lea.vmem %s2, %s2179
      %p2181 = scmp.lt.s32.totalorder %s19, 1
      %s2182 = scalar_select %p2181, %s19, 1
      %s2183 = smul.addr %s2182, 8
      %s2184 = scalar_lea.vmem %s3, %s2183
      // Predicated region
      $region37: #{tpu_custom_call.1} parent=27 // pred_check
        %p2185 = pneg %p94
      $region38: #{tpu_custom_call.1} parent=27 // pred_check_branch
        %2187 = sbr.rel (%p2185) target = $region40
      $region39: #{tpu_custom_call.1} parent=27 // pred_region
        _
      $region40: #{tpu_custom_call.1} parent=27 // pred_fallthru
        _
      // Predicated region
      $region41: #{tpu_custom_call.1} parent=27 // pred_check
        %p2188 = pneg %p120
      $region42: #{tpu_custom_call.1} parent=27 // pred_check_branch
        %2190 = sbr.rel (%p2188) target = $region44
      $region43: #{tpu_custom_call.1} parent=27 // pred_region
        _
      $region44: #{tpu_custom_call.1} parent=27 // pred_fallthru
        _
    $region28: #{tpu_custom_call.1} parent=5 // pred_fallthru
      _
    %p2191 = scmp.le.s32.totalorder 2, %s10
    // Predicated region
    $region45: #{tpu_custom_call.1} parent=5 // pred_check
      %p2192 = pneg %p2191
    $region46: #{tpu_custom_call.1} parent=5 // pred_check_branch
      %2194 = sbr.rel (%p2192) target = $region48
    $region47: #{tpu_custom_call.1} parent=5 // pred_region
      %s2195 = ssub.s32 %s10, 2
      // Predicated region
      $region49: #{tpu_custom_call.1} parent=47 // pred_check
        %p2196 = pneg %p100
      $region50: #{tpu_custom_call.1} parent=47 // pred_check_branch
        %2198 = sbr.rel (%p2196) target = $region52
      $region51: #{tpu_custom_call.1} parent=47 // pred_region
        %p2199 = scmp.lt.s32.totalorder %s21, 1
        %s2200 = scalar_select %p2199, %s21, 1
        %s2201 = smul.addr %s2200, 8
        %s2202 = scalar_lea.vmem %s2, %s2201
      $region52: #{tpu_custom_call.1} parent=47 // pred_fallthru
        _
      // Predicated region
      $region53: #{tpu_custom_call.1} parent=47 // pred_check
        %p2203 = pneg %p126
      $region54: #{tpu_custom_call.1} parent=47 // pred_check_branch
        %2205 = sbr.rel (%p2203) target = $region56
      $region55: #{tpu_custom_call.1} parent=47 // pred_region
        %p2206 = scmp.lt.s32.totalorder %s21, 1
        %s2207 = scalar_select %p2206, %s21, 1
        %s2208 = smul.addr %s2207, 8
        %s2209 = scalar_lea.vmem %s3, %s2208
      $region56: #{tpu_custom_call.1} parent=47 // pred_fallthru
        _
    $region48: #{tpu_custom_call.1} parent=5 // pred_fallthru
      _
  $region6: #{tpu_custom_call.1} parent=0 // loop_footer
    %s14 = sadd.s32 1, %s10
  $region7: #{tpu_custom_call.1} parent=0 // loop_footer_branch
    %9 = sbr.rel target = $region3
  $region8: #{tpu_custom_call.1} parent=0 // loop_exit
    _

</llo_original>
